<compile_context>
chip_gen: v6e
topology: v6e:2x2x1
jax: 0.10.0
libtpu: 0.0.40
codegen_flags: <defaults>
</compile_context>

<pallas_src>
import math
import functools

import jax
import jax.numpy as jnp
from jax.experimental import pallas as pl
from jax.experimental.pallas import tpu as pltpu


# ----------------------------- helpers ---------------------------------------

def _layer_norm(x, gamma, beta, eps=1e-12):
    mu = jnp.mean(x, axis=-1, keepdims=True)
    var = jnp.mean((x - mu) ** 2, axis=-1, keepdims=True)
    return (x - mu) * jax.lax.rsqrt(var + eps) * gamma + beta


def _vmem_limit_bytes(default_bytes=48 * 1024 * 1024):
    """Generation-aware scoped-VMEM limit: ~82% of physical VMEM
    (headroom for compiler scratch / double buffers)."""
    try:
        cap = getattr(pltpu.get_tpu_info(), "vmem_capacity_bytes", None)
        if not cap or cap <= 0:
            return default_bytes
        return int(cap * 0.82)
    except Exception:
        return default_bytes


# ----------------------------- kernel ---------------------------------------

def transformer_stack_kernel(
    x_ref, mask_ref,
    wqkv_ref, wo_ref, w1_ref, w2_ref, vec_ref,
    out_ref,
    h_scratch,
    *, n_heads, head_dim, dim, ffn_dim,
):
    # grid = (num_batch_blocks, L); one step = one layer of one batch block.
    l = pl.program_id(1)
    n_layers = pl.num_programs(1)

    TB, S, _ = x_ref.shape
    D, Dff, H, Hd = dim, ffn_dim, n_heads, head_dim

    # ---- carry: layer 0 seeds the VMEM-resident hidden state ----
    @pl.when(l == 0)
    def _():
        h_scratch[...] = x_ref[...].reshape(TB * S, D)

    h = h_scratch[...]                       # (TB*S, D) f32
    h_bf = h.astype(jnp.bfloat16)

    # ---- unpack the packed per-layer vector parameters (static offsets) ----
    vec = vec_ref[0, 0]                      # (9D + Dff,) f32
    o = 0
    bqkv  = vec[o:o + 3 * D]; o += 3 * D
    bo    = vec[o:o + D];     o += D
    g_sa  = vec[o:o + D];     o += D
    b_sa  = vec[o:o + D];     o += D
    b1    = vec[o:o + Dff];   o += Dff
    b2    = vec[o:o + D];     o += D
    g_out = vec[o:o + D];     o += D
    b_out = vec[o:o + D];     o += D

    # ---- fused Q/K/V projection: one (TB*S, D) @ (D, 3D) MXU pass ----
    # (1/sqrt(head_dim) is pre-folded into the Q columns of wqkv / bqkv.)
    qkv = jnp.dot(h_bf, wqkv_ref[0],
                  preferred_element_type=jnp.float32) + bqkv

    def split_heads(t):                      # (TB*S, D) -> (TB*H, S, Hd) bf16
        t = t.astype(jnp.bfloat16).reshape(TB, S, H, Hd)
        return jnp.transpose(t, (0, 2, 1, 3)).reshape(TB * H, S, Hd)

    qh = split_heads(qkv[:, 0 * D:1 * D])
    kh = split_heads(qkv[:, 1 * D:2 * D])
    vh = split_heads(qkv[:, 2 * D:3 * D])

    # ---- attention: head-major batched matmuls + additive mask bias ----
    scores = jnp.einsum('bqd,bkd->bqk', qh, kh,
                        preferred_element_type=jnp.float32)       # (TB*H, S, S)
    bias = (mask_ref[...] - 1.0) * jnp.float32(1e30)              # (TB, 1, S)
    scores = scores.reshape(TB, H, S, S) + bias[:, :, None, :]
    scores = scores - jnp.max(scores, axis=-1, keepdims=True)
    p = jnp.exp(scores)
    denom = jnp.sum(p, axis=-1, keepdims=True)
    p = p * pl.reciprocal(denom, approx=True)                     # EUP slot

    ctx = jnp.einsum('bqk,bkd->bqd',
                     p.reshape(TB * H, S, S).astype(jnp.bfloat16), vh,
                     preferred_element_type=jnp.float32)          # (TB*H, S, Hd)
    # single head-merge relayout back to (TB*S, D)
    ctx = jnp.transpose(ctx.astype(jnp.bfloat16).reshape(TB, H, S, Hd),
                        (0, 2, 1, 3)).reshape(TB * S, D)

    # ---- output projection + residual + LayerNorm (f32) ----
    attn_out = jnp.dot(ctx, wo_ref[0],
                       preferred_element_type=jnp.float32) + bo
    sa = _layer_norm(attn_out + h, g_sa, b_sa)

    # ---- FFN (lin1 -> GELU -> lin2) + residual + LayerNorm (f32) ----
    h1 = jnp.dot(sa.astype(jnp.bfloat16), w1_ref[0],
                 preferred_element_type=jnp.float32) + b1
    h1 = jax.nn.gelu(h1, approximate=True)                        # tanh -> EUP
    ffn_out = jnp.dot(h1.astype(jnp.bfloat16), w2_ref[0],
                      preferred_element_type=jnp.float32) + b2
    new_h = _layer_norm(ffn_out + sa, g_out, b_out)

    h_scratch[...] = new_h

    # ---- finalize: only the last layer writes the output block ----
    @pl.when(l == n_layers - 1)
    def _():
        out_ref[...] = new_h.reshape(TB, S, D).astype(out_ref.dtype)


# ----------------------------- wrapper ---------------------------------------

def transformer_forward(hidden_states, attention_mask, stacked, *,
                        n_heads, batch_block=None):
    """hidden_states: (B, S, D) f32; attention_mask: (B, S) (1 = keep).
    stacked: dict of L-stacked params (matmul weights bf16, vectors packed).
    Returns last_hidden_state (B, S, D) f32."""
    B, S, D = hidden_states.shape
    L = stacked["wqkv"].shape[0]
    Dff = stacked["w1"].shape[-1]
    head_dim = D // n_heads

    # Batch-block size: per-layer weights are DMA'd once per (layer, batch
    # block), so the largest TB that fits VMEM minimizes weight traffic.
    # On v7x (2 TensorCores) set batch_block=B//2 so both cores get work.
    TB = B if batch_block is None else batch_block
    assert B % TB == 0
    nb = B // TB

    mask3 = attention_mask.reshape(B, 1, S).astype(jnp.float32)

    def wspec(shape):
        nd = len(shape)
        return pl.BlockSpec((1,) + shape,
                            lambda b, l, _nd=nd: (l,) + (0,) * _nd)

    in_specs = [
        pl.BlockSpec((TB, S, D), lambda b, l: (b, 0, 0)),   # hidden_states
        pl.BlockSpec((TB, 1, S), lambda b, l: (b, 0, 0)),   # attention mask
        wspec((D, 3 * D)),                                  # wqkv (bf16)
        wspec((D, D)),                                      # wo   (bf16)
        wspec((D, Dff)),                                    # w1   (bf16)
        wspec((Dff, D)),                                    # w2   (bf16)
        wspec((1, 9 * D + Dff)),                            # packed vectors
    ]

    kernel = functools.partial(
        transformer_stack_kernel,
        n_heads=n_heads, head_dim=head_dim, dim=D, ffn_dim=Dff)

    flops = 2 * B * L * S * (4 * D * D + 2 * D * Dff + 2 * S * D)
    transcendentals = B * L * (n_heads * S * S + S * Dff)
    bytes_accessed = (
        nb * L * 2 * (4 * D * D + 2 * D * Dff)   # bf16 weights per batch block
        + nb * L * 4 * (9 * D + Dff)             # f32 packed vectors
        + 2 * 4 * B * S * D                      # activations in + out (f32)
        + 4 * B * S)                             # mask

    return pl.pallas_call(
        kernel,
        out_shape=jax.ShapeDtypeStruct((B, S, D), jnp.float32),
        grid=(nb, L),
        in_specs=in_specs,
        out_specs=pl.BlockSpec((TB, S, D), lambda b, l: (b, 0, 0)),
        scratch_shapes=[pltpu.VMEM((TB * S, D), jnp.float32)],  # layer carry
        compiler_params=pltpu.CompilerParams(
            dimension_semantics=("parallel", "arbitrary"),
            vmem_limit_bytes=_vmem_limit_bytes()),
        cost_estimate=pl.CostEstimate(
            flops=flops, transcendentals=transcendentals,
            bytes_accessed=bytes_accessed),
    )(
        hidden_states, mask3,
        stacked["wqkv"], stacked["wo"], stacked["w1"], stacked["w2"],
        stacked["vecs"],
    )


# ----------------------------- params ----------------------------------------

def init_layer_params(key, dim, hidden_dim):
    ks = jax.random.split(key, 18)
    s = 0.02
    w = lambda k, shp: jax.random.normal(k, shp, jnp.float32) * s
    return {
        "wq": w(ks[0], (dim, dim)), "bq": w(ks[1], (dim,)),
        "wk": w(ks[2], (dim, dim)), "bk": w(ks[3], (dim,)),
        "wv": w(ks[4], (dim, dim)), "bv": w(ks[5], (dim,)),
        "wo": w(ks[6], (dim, dim)), "bo": w(ks[7], (dim,)),
        "g_sa": 1.0 + 0.1 * jax.random.normal(ks[8], (dim,), jnp.float32),
        "b_sa": w(ks[9], (dim,)),
        "w1": w(ks[10], (dim, hidden_dim)), "b1": w(ks[11], (hidden_dim,)),
        "w2": w(ks[12], (hidden_dim, dim)), "b2": w(ks[13], (dim,)),
        "g_out": 1.0 + 0.1 * jax.random.normal(ks[14], (dim,), jnp.float32),
        "b_out": w(ks[15], (dim,)),
    }


def stack_layer_params(layer_params, n_heads):
    """Stack per-layer params along a leading L axis.  Q/K/V are fused on the
    output axis with 1/sqrt(head_dim) folded into the Q columns; matmul weights
    are stored bf16; the 8 small vectors are packed into one row per layer."""
    D = layer_params[0]["wq"].shape[0]
    Dff = layer_params[0]["w1"].shape[1]
    scale = 1.0 / math.sqrt(D // n_heads)

    wqkv, wo, w1, w2, vecs = [], [], [], [], []
    for p in layer_params:
        wqkv.append(jnp.concatenate([p["wq"] * scale, p["wk"], p["wv"]],
                                    axis=1))
        wo.append(p["wo"]); w1.append(p["w1"]); w2.append(p["w2"])
        vecs.append(jnp.concatenate([
            p["bq"] * scale, p["bk"], p["bv"],
            p["bo"], p["g_sa"], p["b_sa"],
            p["b1"], p["b2"], p["g_out"], p["b_out"]], axis=0))

    L = len(layer_params)
    return {
        "wqkv": jnp.stack(wqkv).astype(jnp.bfloat16),
        "wo":   jnp.stack(wo).astype(jnp.bfloat16),
        "w1":   jnp.stack(w1).astype(jnp.bfloat16),
        "w2":   jnp.stack(w2).astype(jnp.bfloat16),
        "vecs": jnp.stack(vecs).reshape(L, 1, 9 * D + Dff).astype(jnp.float32),
    }


# ----------------------------- pure-JAX reference -----------------------------

def transformer_reference(x, mask, layer_params, n_heads):
    B, S, D = x.shape
    H = n_heads
    Hd = D // H
    h = x
    for p in layer_params:
        q = (h @ p["wq"] + p["bq"]) / math.sqrt(Hd)
        k = h @ p["wk"] + p["bk"]
        v = h @ p["wv"] + p["bv"]
        q = jnp.transpose(q.reshape(B, S, H, Hd), (0, 2, 1, 3))
        k = jnp.transpose(k.reshape(B, S, H, Hd), (0, 2, 1, 3))
        v = jnp.transpose(v.reshape(B, S, H, Hd), (0, 2, 1, 3))
        scores = jnp.einsum('bhqd,bhkd->bhqk', q, k)
        scores = jnp.where((mask == 0)[:, None, None, :], -jnp.inf, scores)
        w = jax.nn.softmax(scores, axis=-1)
        ctx = jnp.einsum('bhqk,bhkd->bhqd', w, v)
        ctx = jnp.transpose(ctx, (0, 2, 1, 3)).reshape(B, S, D)
        attn = ctx @ p["wo"] + p["bo"]
        sa = _layer_norm(attn + h, p["g_sa"], p["b_sa"])
        h1 = jax.nn.gelu(sa @ p["w1"] + p["b1"], approximate=False)
        ffn = h1 @ p["w2"] + p["b2"]
        h = _layer_norm(ffn + sa, p["g_out"], p["b_out"])
    return h


# ----------------------------- main -------------------------------------------

if __name__ == "__main__":
    # Small config consistent with the module: bs=2, seq=8, dim=32, 4 heads,
    # ffn hidden_dim=64, n_layers=2.  (Toy shapes: every lane dim < 128, so do
    # not draw performance conclusions from this config.)
    B, S, D = 2, 8, 32
    N_HEADS = 4
    HIDDEN_DIM = 64
    N_LAYERS = 2

    key = jax.random.PRNGKey(0)
    k_x, k_params = jax.random.split(key)

    hidden_states = jax.random.normal(k_x, (B, S, D), jnp.float32)
    # 1 = keep, 0 = masked; mask the last two tokens of the second sequence.
    attention_mask = jnp.ones((B, S), jnp.float32).at[1, S - 2:].set(0.0)

    layer_keys = jax.random.split(k_params, N_LAYERS)
    layer_params = [init_layer_params(k, D, HIDDEN_DIM) for k in layer_keys]
    stacked = stack_layer_params(layer_params, N_HEADS)

    out = transformer_forward(hidden_states, attention_mask, stacked,
                              n_heads=N_HEADS)
    out = jax.block_until_ready(out)

    assert out.shape == (B, S, D)
    assert bool(jnp.all(jnp.isfinite(out)))

    ref = transformer_reference(hidden_states, attention_mask, layer_params,
                                N_HEADS)
    max_err = float(jnp.max(jnp.abs(out - ref)))
    # bf16 MXU + approx reciprocal + tanh GELU vs f32 erf reference.
    assert max_err < 7e-2, f"max abs error {max_err}"

    print("KERNEL_OK")
</pallas_src>

<mosaic_0001>
module attributes {stable_mosaic.version = 11 : i64} {
  func.func @transformer_stack_kernel(%arg0: i32, %arg1: i32, %arg2: memref<2x8x32xf32, #tpu.memory_space<vmem>>, %arg3: memref<2x1x8xf32, #tpu.memory_space<vmem>>, %arg4: memref<1x32x96xbf16, #tpu.memory_space<vmem>>, %arg5: memref<1x32x32xbf16, #tpu.memory_space<vmem>>, %arg6: memref<1x32x64xbf16, #tpu.memory_space<vmem>>, %arg7: memref<1x64x32xbf16, #tpu.memory_space<vmem>>, %arg8: memref<1x1x352xf32, #tpu.memory_space<vmem>>, %arg9: memref<2x8x32xf32, #tpu.memory_space<vmem>>, %arg10: memref<16x32xf32, #tpu.memory_space<vmem>>) attributes {dimension_semantics = [#tpu.dimension_semantics<parallel>, #tpu.dimension_semantics<arbitrary>], iteration_bounds = array<i64: 1, 2>, scalar_prefetch = 0 : i64, scratch_operands = 1 : i64, tpu.core_type = #tpu.core_type<tc>, window_params = [{transform_indices = @transform_0, window_bounds = array<i64: 2, 8, 32>}, {transform_indices = @transform_1, window_bounds = array<i64: 2, 1, 8>}, {transform_indices = @transform_2, window_bounds = array<i64: 1, 32, 96>}, {transform_indices = @transform_3, window_bounds = array<i64: 1, 32, 32>}, {transform_indices = @transform_4, window_bounds = array<i64: 1, 32, 64>}, {transform_indices = @transform_5, window_bounds = array<i64: 1, 64, 32>}, {transform_indices = @transform_6, window_bounds = array<i64: 1, 1, 352>}, {transform_indices = @transform_7, window_bounds = array<i64: 2, 8, 32>}]} {
    %c0_i32 = arith.constant 0 : i32
    %0 = arith.cmpi eq, %arg1, %c0_i32 : i32
    %1 = arith.extui %0 : i1 to i32
    %c0_i32_0 = arith.constant 0 : i32
    %2 = arith.cmpi ne, %1, %c0_i32_0 : i32
    scf.if %2 {
      %c0_46 = arith.constant 0 : index
      %c0_47 = arith.constant 0 : index
      %c0_48 = arith.constant 0 : index
      %150 = vector.load %arg2[%c0_46, %c0_47, %c0_48] : memref<2x8x32xf32, #tpu.memory_space<vmem>>, vector<2x8x32xf32>
      %151 = vector.shape_cast %150 : vector<2x8x32xf32> to vector<16x32xf32>
      %c0_49 = arith.constant 0 : index
      %c0_50 = arith.constant 0 : index
      %152 = vector.load %arg10[%c0_49, %c0_50] : memref<16x32xf32, #tpu.memory_space<vmem>>, vector<16x32xf32>
      tpu.vector_store %arg10[%c0_49, %c0_50], %151 {strides = array<i32>} : memref<16x32xf32, #tpu.memory_space<vmem>>, vector<16x32xf32>,
    } else {
    }
    %c0 = arith.constant 0 : index
    %c0_1 = arith.constant 0 : index
    %3 = vector.load %arg10[%c0, %c0_1] : memref<16x32xf32, #tpu.memory_space<vmem>>, vector<16x32xf32>
    %4 = arith.truncf %3 : vector<16x32xf32> to vector<16x32xbf16>
    %c0_2 = arith.constant 0 : index
    %c0_3 = arith.constant 0 : index
    %c0_4 = arith.constant 0 : index
    %5 = vector.load %arg8[%c0_2, %c0_3, %c0_4] : memref<1x1x352xf32, #tpu.memory_space<vmem>>, vector<1x1x352xf32>
    %6 = vector.shape_cast %5 : vector<1x1x352xf32> to vector<352xf32>
    %7 = vector.extract_strided_slice %6 {offsets = [0], sizes = [96], strides = [1]} : vector<352xf32> to vector<96xf32>
    %8 = vector.extract_strided_slice %6 {offsets = [96], sizes = [32], strides = [1]} : vector<352xf32> to vector<32xf32>
    %9 = vector.extract_strided_slice %6 {offsets = [128], sizes = [32], strides = [1]} : vector<352xf32> to vector<32xf32>
    %10 = vector.extract_strided_slice %6 {offsets = [160], sizes = [32], strides = [1]} : vector<352xf32> to vector<32xf32>
    %11 = vector.extract_strided_slice %6 {offsets = [192], sizes = [64], strides = [1]} : vector<352xf32> to vector<64xf32>
    %12 = vector.extract_strided_slice %6 {offsets = [256], sizes = [32], strides = [1]} : vector<352xf32> to vector<32xf32>
    %13 = vector.extract_strided_slice %6 {offsets = [288], sizes = [32], strides = [1]} : vector<352xf32> to vector<32xf32>
    %14 = vector.extract_strided_slice %6 {offsets = [320], sizes = [32], strides = [1]} : vector<352xf32> to vector<32xf32>
    %c0_5 = arith.constant 0 : index
    %c0_6 = arith.constant 0 : index
    %c0_7 = arith.constant 0 : index
    %15 = vector.load %arg4[%c0_5, %c0_6, %c0_7] : memref<1x32x96xbf16, #tpu.memory_space<vmem>>, vector<1x32x96xbf16>
    %16 = vector.shape_cast %15 : vector<1x32x96xbf16> to vector<32x96xbf16>
    %cst = arith.constant dense<0.000000e+00> : vector<16x96xf32>
    %17 = tpu.matmul %4, %16, %cst {dimension_numbers = #tpu.dot_dimension_numbers<[1], [0], [0], [1], [0, 0, 1, 1], [], []>} : vector<16x32xbf16>, vector<32x96xbf16>, vector<16x96xf32> -> vector<16x96xf32>
    %18 = vector.shape_cast %7 : vector<96xf32> to vector<1x96xf32>
    %19 = vector.broadcast %18 : vector<1x96xf32> to vector<16x96xf32>
    %20 = arith.addf %17, %19 : vector<16x96xf32>
    %21 = vector.extract_strided_slice %20 {offsets = [0, 0], sizes = [16, 32], strides = [1, 1]} : vector<16x96xf32> to vector<16x32xf32>
    %22 = arith.truncf %21 : vector<16x32xf32> to vector<16x32xbf16>
    %23 = vector.shape_cast %22 : vector<16x32xbf16> to vector<2x8x4x8xbf16>
    %24 = tpu.transpose %23, [0, 2, 1, 3] : vector<2x8x4x8xbf16> -> vector<2x4x8x8xbf16>
    %25 = vector.shape_cast %24 : vector<2x4x8x8xbf16> to vector<8x8x8xbf16>
    %26 = vector.extract_strided_slice %20 {offsets = [0, 32], sizes = [16, 32], strides = [1, 1]} : vector<16x96xf32> to vector<16x32xf32>
    %27 = arith.truncf %26 : vector<16x32xf32> to vector<16x32xbf16>
    %28 = vector.shape_cast %27 : vector<16x32xbf16> to vector<2x8x4x8xbf16>
    %29 = tpu.transpose %28, [0, 2, 1, 3] : vector<2x8x4x8xbf16> -> vector<2x4x8x8xbf16>
    %30 = vector.shape_cast %29 : vector<2x4x8x8xbf16> to vector<8x8x8xbf16>
    %31 = vector.extract_strided_slice %20 {offsets = [0, 64], sizes = [16, 32], strides = [1, 1]} : vector<16x96xf32> to vector<16x32xf32>
    %32 = arith.truncf %31 : vector<16x32xf32> to vector<16x32xbf16>
    %33 = vector.shape_cast %32 : vector<16x32xbf16> to vector<2x8x4x8xbf16>
    %34 = tpu.transpose %33, [0, 2, 1, 3] : vector<2x8x4x8xbf16> -> vector<2x4x8x8xbf16>
    %35 = vector.shape_cast %34 : vector<2x4x8x8xbf16> to vector<8x8x8xbf16>
    "tpu.trace_start"() <{level = 10 : i32, message = "bqd,bkd->bqk"}> : () -> ()
    %cst_8 = arith.constant dense<0.000000e+00> : vector<8x8x8xf32>
    %36 = tpu.matmul %25, %30, %cst_8 {dimension_numbers = #tpu.dot_dimension_numbers<[2], [2], [1], [1], [0, 0, 0, 1, 1, 1], [0], [0]>} : vector<8x8x8xbf16>, vector<8x8x8xbf16>, vector<8x8x8xf32> -> vector<8x8x8xf32>
    "tpu.trace_stop"() : () -> ()
    %c0_9 = arith.constant 0 : index
    %c0_10 = arith.constant 0 : index
    %c0_11 = arith.constant 0 : index
    %37 = vector.load %arg3[%c0_9, %c0_10, %c0_11] : memref<2x1x8xf32, #tpu.memory_space<vmem>>, vector<2x1x8xf32>
    %cst_12 = arith.constant 1.000000e+00 : f32
    %38 = vector.broadcast %cst_12 : f32 to vector<2x1x8xf32>
    %39 = arith.subf %37, %38 : vector<2x1x8xf32>
    %cst_13 = arith.constant 1.000000e+30 : f32
    %40 = vector.broadcast %cst_13 : f32 to vector<2x1x8xf32>
    %41 = arith.mulf %39, %40 : vector<2x1x8xf32>
    %42 = vector.shape_cast %36 : vector<8x8x8xf32> to vector<2x4x8x8xf32>
    %43 = vector.shape_cast %41 : vector<2x1x8xf32> to vector<2x1x1x8xf32>
    %44 = vector.broadcast %43 : vector<2x1x1x8xf32> to vector<2x4x8x8xf32>
    %45 = arith.addf %42, %44 : vector<2x4x8x8xf32>
    %cst_14 = arith.constant dense<0xFF800000> : vector<2x4x8xf32>
    %46 = vector.multi_reduction <maximumf>, %45, %cst_14 [3] : vector<2x4x8x8xf32> to vector<2x4x8xf32>
    %47 = vector.shape_cast %46 : vector<2x4x8xf32> to vector<2x4x8x1xf32>
    %48 = vector.broadcast %47 : vector<2x4x8x1xf32> to vector<2x4x8x8xf32>
    %49 = arith.subf %45, %48 : vector<2x4x8x8xf32>
    %50 = math.exp %49 : vector<2x4x8x8xf32>
    %cst_15 = arith.constant dense<0.000000e+00> : vector<2x4x8xf32>
    %51 = vector.multi_reduction <add>, %50, %cst_15 [3] : vector<2x4x8x8xf32> to vector<2x4x8xf32>
    %52 = vector.shape_cast %51 : vector<2x4x8xf32> to vector<2x4x8x1xf32>
    %53 = tpu.reciprocal %52 {approx = true} : vector<2x4x8x1xf32> -> vector<2x4x8x1xf32>
    %54 = vector.broadcast %53 : vector<2x4x8x1xf32> to vector<2x4x8x8xf32>
    %55 = arith.mulf %50, %54 : vector<2x4x8x8xf32>
    %56 = vector.shape_cast %55 : vector<2x4x8x8xf32> to vector<8x8x8xf32>
    %57 = arith.truncf %56 : vector<8x8x8xf32> to vector<8x8x8xbf16>
    "tpu.trace_start"() <{level = 10 : i32, message = "bqk,bkd->bqd"}> : () -> ()
    %cst_16 = arith.constant dense<0.000000e+00> : vector<8x8x8xf32>
    %58 = tpu.matmul %57, %35, %cst_16 {dimension_numbers = #tpu.dot_dimension_numbers<[2], [1], [1], [2], [0, 0, 0, 1, 1, 2], [0], [0]>} : vector<8x8x8xbf16>, vector<8x8x8xbf16>, vector<8x8x8xf32> -> vector<8x8x8xf32>
    "tpu.trace_stop"() : () -> ()
    %59 = arith.truncf %58 : vector<8x8x8xf32> to vector<8x8x8xbf16>
    %60 = vector.shape_cast %59 : vector<8x8x8xbf16> to vector<2x4x8x8xbf16>
    %61 = tpu.transpose %60, [0, 2, 1, 3] : vector<2x4x8x8xbf16> -> vector<2x8x4x8xbf16>
    %62 = vector.shape_cast %61 : vector<2x8x4x8xbf16> to vector<16x32xbf16>
    %c0_17 = arith.constant 0 : index
    %c0_18 = arith.constant 0 : index
    %c0_19 = arith.constant 0 : index
    %63 = vector.load %arg5[%c0_17, %c0_18, %c0_19] : memref<1x32x32xbf16, #tpu.memory_space<vmem>>, vector<1x32x32xbf16>
    %64 = vector.shape_cast %63 : vector<1x32x32xbf16> to vector<32x32xbf16>
    %cst_20 = arith.constant dense<0.000000e+00> : vector<16x32xf32>
    %65 = tpu.matmul %62, %64, %cst_20 {dimension_numbers = #tpu.dot_dimension_numbers<[1], [0], [0], [1], [0, 0, 1, 1], [], []>} : vector<16x32xbf16>, vector<32x32xbf16>, vector<16x32xf32> -> vector<16x32xf32>
    %66 = vector.shape_cast %8 : vector<32xf32> to vector<1x32xf32>
    %67 = vector.broadcast %66 : vector<1x32xf32> to vector<16x32xf32>
    %68 = arith.addf %65, %67 : vector<16x32xf32>
    %69 = arith.addf %68, %3 : vector<16x32xf32>
    %cst_21 = arith.constant dense<0.000000e+00> : vector<16xf32>
    %70 = vector.multi_reduction <add>, %69, %cst_21 [1] : vector<16x32xf32> to vector<16xf32>
    %71 = vector.shape_cast %70 : vector<16xf32> to vector<16x1xf32>
    %cst_22 = arith.constant 3.200000e+01 : f32
    %72 = vector.broadcast %cst_22 : f32 to vector<16x1xf32>
    %73 = arith.divf %71, %72 : vector<16x1xf32>
    %74 = vector.broadcast %73 : vector<16x1xf32> to vector<16x32xf32>
    %75 = arith.subf %69, %74 : vector<16x32xf32>
    %76 = arith.mulf %75, %75 : vector<16x32xf32>
    %cst_23 = arith.constant dense<0.000000e+00> : vector<16xf32>
    %77 = vector.multi_reduction <add>, %76, %cst_23 [1] : vector<16x32xf32> to vector<16xf32>
    %78 = vector.shape_cast %77 : vector<16xf32> to vector<16x1xf32>
    %cst_24 = arith.constant 3.200000e+01 : f32
    %79 = vector.broadcast %cst_24 : f32 to vector<16x1xf32>
    %80 = arith.divf %78, %79 : vector<16x1xf32>
    %81 = vector.broadcast %73 : vector<16x1xf32> to vector<16x32xf32>
    %82 = arith.subf %69, %81 : vector<16x32xf32>
    %cst_25 = arith.constant 9.99999996E-13 : f32
    %83 = vector.broadcast %cst_25 : f32 to vector<16x1xf32>
    %84 = arith.addf %80, %83 : vector<16x1xf32>
    %85 = math.rsqrt %84 : vector<16x1xf32>
    %86 = vector.broadcast %85 : vector<16x1xf32> to vector<16x32xf32>
    %87 = arith.mulf %82, %86 : vector<16x32xf32>
    %88 = vector.shape_cast %9 : vector<32xf32> to vector<1x32xf32>
    %89 = vector.broadcast %88 : vector<1x32xf32> to vector<16x32xf32>
    %90 = arith.mulf %87, %89 : vector<16x32xf32>
    %91 = vector.shape_cast %10 : vector<32xf32> to vector<1x32xf32>
    %92 = vector.broadcast %91 : vector<1x32xf32> to vector<16x32xf32>
    %93 = arith.addf %90, %92 : vector<16x32xf32>
    %94 = arith.truncf %93 : vector<16x32xf32> to vector<16x32xbf16>
    %c0_26 = arith.constant 0 : index
    %c0_27 = arith.constant 0 : index
    %c0_28 = arith.constant 0 : index
    %95 = vector.load %arg6[%c0_26, %c0_27, %c0_28] : memref<1x32x64xbf16, #tpu.memory_space<vmem>>, vector<1x32x64xbf16>
    %96 = vector.shape_cast %95 : vector<1x32x64xbf16> to vector<32x64xbf16>
    %cst_29 = arith.constant dense<0.000000e+00> : vector<16x64xf32>
    %97 = tpu.matmul %94, %96, %cst_29 {dimension_numbers = #tpu.dot_dimension_numbers<[1], [0], [0], [1], [0, 0, 1, 1], [], []>} : vector<16x32xbf16>, vector<32x64xbf16>, vector<16x64xf32> -> vector<16x64xf32>
    %98 = vector.shape_cast %11 : vector<64xf32> to vector<1x64xf32>
    %99 = vector.broadcast %98 : vector<1x64xf32> to vector<16x64xf32>
    %100 = arith.addf %97, %99 : vector<16x64xf32>
    %101 = arith.mulf %100, %100 : vector<16x64xf32>
    %102 = arith.mulf %100, %101 : vector<16x64xf32>
    %cst_30 = arith.constant 4.471500e-02 : f32
    %103 = vector.broadcast %cst_30 : f32 to vector<16x64xf32>
    %104 = arith.mulf %103, %102 : vector<16x64xf32>
    %105 = arith.addf %100, %104 : vector<16x64xf32>
    %cst_31 = arith.constant 0.797884583 : f32
    %106 = vector.broadcast %cst_31 : f32 to vector<16x64xf32>
    %107 = arith.mulf %106, %105 : vector<16x64xf32>
    %108 = math.tanh %107 : vector<16x64xf32>
    %cst_32 = arith.constant 1.000000e+00 : f32
    %109 = vector.broadcast %cst_32 : f32 to vector<16x64xf32>
    %110 = arith.addf %109, %108 : vector<16x64xf32>
    %cst_33 = arith.constant 5.000000e-01 : f32
    %111 = vector.broadcast %cst_33 : f32 to vector<16x64xf32>
    %112 = arith.mulf %111, %110 : vector<16x64xf32>
    %113 = arith.mulf %100, %112 : vector<16x64xf32>
    %114 = arith.truncf %113 : vector<16x64xf32> to vector<16x64xbf16>
    %c0_34 = arith.constant 0 : index
    %c0_35 = arith.constant 0 : index
    %c0_36 = arith.constant 0 : index
    %115 = vector.load %arg7[%c0_34, %c0_35, %c0_36] : memref<1x64x32xbf16, #tpu.memory_space<vmem>>, vector<1x64x32xbf16>
    %116 = vector.shape_cast %115 : vector<1x64x32xbf16> to vector<64x32xbf16>
    %cst_37 = arith.constant dense<0.000000e+00> : vector<16x32xf32>
    %117 = tpu.matmul %114, %116, %cst_37 {dimension_numbers = #tpu.dot_dimension_numbers<[1], [0], [0], [1], [0, 0, 1, 1], [], []>} : vector<16x64xbf16>, vector<64x32xbf16>, vector<16x32xf32> -> vector<16x32xf32>
    %118 = vector.shape_cast %12 : vector<32xf32> to vector<1x32xf32>
    %119 = vector.broadcast %118 : vector<1x32xf32> to vector<16x32xf32>
    %120 = arith.addf %117, %119 : vector<16x32xf32>
    %121 = arith.addf %120, %93 : vector<16x32xf32>
    %cst_38 = arith.constant dense<0.000000e+00> : vector<16xf32>
    %122 = vector.multi_reduction <add>, %121, %cst_38 [1] : vector<16x32xf32> to vector<16xf32>
    %123 = vector.shape_cast %122 : vector<16xf32> to vector<16x1xf32>
    %cst_39 = arith.constant 3.200000e+01 : f32
    %124 = vector.broadcast %cst_39 : f32 to vector<16x1xf32>
    %125 = arith.divf %123, %124 : vector<16x1xf32>
    %126 = vector.broadcast %125 : vector<16x1xf32> to vector<16x32xf32>
    %127 = arith.subf %121, %126 : vector<16x32xf32>
    %128 = arith.mulf %127, %127 : vector<16x32xf32>
    %cst_40 = arith.constant dense<0.000000e+00> : vector<16xf32>
    %129 = vector.multi_reduction <add>, %128, %cst_40 [1] : vector<16x32xf32> to vector<16xf32>
    %130 = vector.shape_cast %129 : vector<16xf32> to vector<16x1xf32>
    %cst_41 = arith.constant 3.200000e+01 : f32
    %131 = vector.broadcast %cst_41 : f32 to vector<16x1xf32>
    %132 = arith.divf %130, %131 : vector<16x1xf32>
    %133 = vector.broadcast %125 : vector<16x1xf32> to vector<16x32xf32>
    %134 = arith.subf %121, %133 : vector<16x32xf32>
    %cst_42 = arith.constant 9.99999996E-13 : f32
    %135 = vector.broadcast %cst_42 : f32 to vector<16x1xf32>
    %136 = arith.addf %132, %135 : vector<16x1xf32>
    %137 = math.rsqrt %136 : vector<16x1xf32>
    %138 = vector.broadcast %137 : vector<16x1xf32> to vector<16x32xf32>
    %139 = arith.mulf %134, %138 : vector<16x32xf32>
    %140 = vector.shape_cast %13 : vector<32xf32> to vector<1x32xf32>
    %141 = vector.broadcast %140 : vector<1x32xf32> to vector<16x32xf32>
    %142 = arith.mulf %139, %141 : vector<16x32xf32>
    %143 = vector.shape_cast %14 : vector<32xf32> to vector<1x32xf32>
    %144 = vector.broadcast %143 : vector<1x32xf32> to vector<16x32xf32>
    %145 = arith.addf %142, %144 : vector<16x32xf32>
    %c0_43 = arith.constant 0 : index
    %c0_44 = arith.constant 0 : index
    %146 = vector.load %arg10[%c0_43, %c0_44] : memref<16x32xf32, #tpu.memory_space<vmem>>, vector<16x32xf32>
    tpu.vector_store %arg10[%c0_43, %c0_44], %145 {strides = array<i32>} : memref<16x32xf32, #tpu.memory_space<vmem>>, vector<16x32xf32>,
    %c1_i32 = arith.constant 1 : i32
    %147 = arith.cmpi eq, %arg1, %c1_i32 : i32
    %148 = arith.extui %147 : i1 to i32
    %c0_i32_45 = arith.constant 0 : i32
    %149 = arith.cmpi ne, %148, %c0_i32_45 : i32
    scf.if %149 {
      %150 = vector.shape_cast %145 : vector<16x32xf32> to vector<2x8x32xf32>
      %c0_46 = arith.constant 0 : index
      %c0_47 = arith.constant 0 : index
      %c0_48 = arith.constant 0 : index
      %151 = vector.load %arg9[%c0_46, %c0_47, %c0_48] : memref<2x8x32xf32, #tpu.memory_space<vmem>>, vector<2x8x32xf32>
      tpu.vector_store %arg9[%c0_46, %c0_47, %c0_48], %150 {strides = array<i32>} : memref<2x8x32xf32, #tpu.memory_space<vmem>>, vector<2x8x32xf32>,
    } else {
    }
    return
  }
  func.func @transform_0(%arg0: i32, %arg1: i32) -> (i32, i32, i32) {
    %c0_i32 = arith.constant 0 : i32
    %c0_i32_0 = arith.constant 0 : i32
    %c0_i32_1 = arith.constant 0 : i32
    return %arg0, %c0_i32, %c0_i32_0 : i32, i32, i32
  }
  func.func @transform_1(%arg0: i32, %arg1: i32) -> (i32, i32, i32) {
    %c0_i32 = arith.constant 0 : i32
    %c0_i32_0 = arith.constant 0 : i32
    %c0_i32_1 = arith.constant 0 : i32
    return %arg0, %c0_i32, %c0_i32_0 : i32, i32, i32
  }
  func.func @transform_2(%arg0: i32, %arg1: i32) -> (i32, i32, i32) {
    %c0_i32 = arith.constant 0 : i32
    %c0_i32_0 = arith.constant 0 : i32
    %c0_i32_1 = arith.constant 0 : i32
    return %arg1, %c0_i32, %c0_i32_0 : i32, i32, i32
  }
  func.func @transform_3(%arg0: i32, %arg1: i32) -> (i32, i32, i32) {
    %c0_i32 = arith.constant 0 : i32
    %c0_i32_0 = arith.constant 0 : i32
    %c0_i32_1 = arith.constant 0 : i32
    return %arg1, %c0_i32, %c0_i32_0 : i32, i32, i32
  }
  func.func @transform_4(%arg0: i32, %arg1: i32) -> (i32, i32, i32) {
    %c0_i32 = arith.constant 0 : i32
    %c0_i32_0 = arith.constant 0 : i32
    %c0_i32_1 = arith.constant 0 : i32
    return %arg1, %c0_i32, %c0_i32_0 : i32, i32, i32
  }
  func.func @transform_5(%arg0: i32, %arg1: i32) -> (i32, i32, i32) {
    %c0_i32 = arith.constant 0 : i32
    %c0_i32_0 = arith.constant 0 : i32
    %c0_i32_1 = arith.constant 0 : i32
    return %arg1, %c0_i32, %c0_i32_0 : i32, i32, i32
  }
  func.func @transform_6(%arg0: i32, %arg1: i32) -> (i32, i32, i32) {
    %c0_i32 = arith.constant 0 : i32
    %c0_i32_0 = arith.constant 0 : i32
    %c0_i32_1 = arith.constant 0 : i32
    return %arg1, %c0_i32, %c0_i32_0 : i32, i32, i32
  }
  func.func @transform_7(%arg0: i32, %arg1: i32) -> (i32, i32, i32) {
    %c0_i32 = arith.constant 0 : i32
    %c0_i32_0 = arith.constant 0 : i32
    %c0_i32_1 = arith.constant 0 : i32
    return %arg0, %c0_i32, %c0_i32_0 : i32, i32, i32
  }
}

</mosaic_0001>

<llo_original>
// kernel: tpu_custom_call.1
$region0: #{tpu_custom_call.1}
  #allocation0 [shape = 'u32[]', space=smem, size = 0x4, offset = 0x4, fixed_abs, tag = 'smem constant byte address 0x4 - core index']
  #allocation1 [shape = 'u32[144,128]{1,0:T(1,128)}', space=vmem, size = 0x12000, scoped, tag = 'internal scratch']
  #allocation2 [shape = 'f32[16,32]{1,0:T(8,128)}', space=vmem, size = 0x2000, scoped, tag = 'scratch operand']
  %s0 = inlined_call_operand.hbm [shape: f32[2,8,32], index: 0, kind: input, shape index: {}]
  %s1 = inlined_call_operand.hbm [shape: f32[2,1,8], index: 1, kind: input, shape index: {}]
  %s2 = inlined_call_operand.vmem [shape: bf16[2,32,96], index: 2, kind: input, shape index: {}]
  %s3 = inlined_call_operand.vmem [shape: bf16[2,32,32], index: 3, kind: input, shape index: {}]
  %s4 = inlined_call_operand.vmem [shape: bf16[2,32,64], index: 4, kind: input, shape index: {}]
  %s5 = inlined_call_operand.vmem [shape: bf16[2,64,32], index: 5, kind: input, shape index: {}]
  %s6 = inlined_call_operand.vmem [shape: f32[2,1,352], index: 6, kind: input, shape index: {}]
  %s7 = inlined_call_operand.hbm [shape: f32[2,8,32], index: 7, kind: output, shape index: {}]
  %s8 = sld [smem:[#allocation0]]
  $region77: #{tpu_custom_call.1} parent=0
    _
  %s10 = ssub.s32 1, %s8
  %s11 = scalar_select 0, %s10, %s8
  $region1: #{tpu_custom_call.1} parent=0
    #allocation3 [shape = 'u8[8192]{0}', space=vmem, size = 0x2000, scoped, tag = 'input window, operand 0, single buffered']
    #allocation4 [shape = 's32[2]{0}', space=sflag, size = 0x8, scoped, tag = 'scoped memory for tpu_custom_call.1']
    #allocation5 [shape = 's32[2]{0}', space=sflag, size = 0x8, scoped, tag = 'scoped memory for tpu_custom_call.1']
    #allocation6 [shape = 'u8[1024]{0}', space=vmem, size = 0x400, scoped, tag = 'input window, operand 1, single buffered']
    #allocation7 [shape = 's32[1]{0}', space=sflag, size = 0x4, scoped, tag = 'scoped memory for tpu_custom_call.1']
    #allocation8 [shape = 'u8[8192]{0}', space=vmem, size = 0x2000, scoped, tag = 'output window, operand 0, single buffered']
    %12 = vsyncpa [#allocation4], 0
    %13 = vsyncpa [#allocation7], 0
    %14 = vsyncpa [#allocation5], 0
    loop: start=0, step=1, limit=4
    $region2: #{tpu_custom_call.1} parent=1 // loop_pre_header
      _
    $region3: #{tpu_custom_call.1} parent=1 // loop_header
      %s16 = sphi 0, %s20
      %p17 = scmp.ge.s32.totalorder %s16, 4
      %s23 = sphi 0, %s35
      %s24 = sphi 0, %s31
      %s25 = sphi 0, %s23
      %s26 = sphi 0, %s24
      %s27 = sphi 0, %s25
      %s28 = sphi 0, %s26
      %s38 = sphi 0, %s40
      %s41 = sphi 0, %s38
      %s42 = sphi 0, %s41
      %s58 = sphi 0, %s42
      %s64 = sphi 0, %s66
      %s67 = sphi 0, %s64
      %s68 = sphi 0, %s67
      %s84 = sphi 0, %s68
      %s90 = sphi 0, %s92
      %s93 = sphi 0, %s90
      %s94 = sphi 0, %s93
      %s110 = sphi 0, %s94
      %s116 = sphi 0, %s118
      %s119 = sphi 0, %s116
      %s120 = sphi 0, %s119
      %s136 = sphi 0, %s120
      %s142 = sphi 0, %s144
      %s145 = sphi 0, %s142
      %s146 = sphi 0, %s145
      %s162 = sphi 0, %s146
      %s168 = sphi 0, %s170
      %s171 = sphi 0, %s168
      %s172 = sphi 0, %s171
      %s188 = sphi 0, %s172
      %s194 = sphi 0, %s196
      %s197 = sphi 0, %s194
      %s198 = sphi 0, %s197
      %s214 = sphi 0, %s198
      %s220 = sphi 0, %s222
      %s223 = sphi 0, %s220
      %s224 = sphi 0, %s223
      %s240 = sphi 0, %s224
    $region4: #{tpu_custom_call.1} parent=1 // loop_header_branch
      %19 = sbr.rel (%p17) target = $region8
    $region5: #{tpu_custom_call.1} parent=1 // loop_body
      %s21 = ssub.s32 %s16, 1
      %s22 = ssub.s32 %s16, 2
      %s29 = sadd.s32 1, %s24
      %p30 = scmp.ge.s32.totalorder %s29, 2
      %s31 = scalar_select %p30, 0, %s29
      %s32 = sadd.s32 1, %s23
      %s33 = scalar_select %p30, %s32, %s23
      %p34 = scmp.ge.s32.totalorder %s33, 1
      %s35 = scalar_select %p34, 0, %s33
      %s36 = ssub.s32 %s23, %s35
      %p37 = scmp.eq.s32.totalorder %s36, 0
      %s39 = sadd.s32 %s38, 1
      %s40 = scalar_select %p37, %s38, %s39
      %p43 = pneg %p37
      %p44 = scmp.eq.s32.totalorder %s16, 1
      %p45 = por %p43, %p44
      %p46 = scmp.ne.s32.totalorder %s38, %s41
      %p47 = scmp.eq.s32.totalorder %s16, 0
      %p48 = por %p46, %p47
      %p49 = scmp.ne.s32.totalorder %s38, %s41
      %p50 = scmp.eq.s32.totalorder %s21, 1
      %p51 = por %p49, %p50
      %p52 = scmp.ne.s32.totalorder %s41, %s42
      %p53 = scmp.eq.s32.totalorder %s21, 0
      %p54 = por %p52, %p53
      %p55 = scmp.ne.s32.totalorder %s41, %s42
      %p56 = scmp.eq.s32.totalorder %s22, 1
      %p57 = por %p55, %p56
      %p59 = scmp.ne.s32.totalorder %s42, %s58
      %p60 = scmp.eq.s32.totalorder %s22, 0
      %p61 = por %p59, %p60
      %s62 = ssub.s32 %s23, %s35
      %p63 = scmp.eq.s32.totalorder %s62, 0
      %s65 = sadd.s32 %s64, 1
      %s66 = scalar_select %p63, %s64, %s65
      %p69 = pneg %p63
      %p70 = scmp.eq.s32.totalorder %s16, 1
      %p71 = por %p69, %p70
      %p72 = scmp.ne.s32.totalorder %s64, %s67
      %p73 = scmp.eq.s32.totalorder %s16, 0
      %p74 = por %p72, %p73
      %p75 = scmp.ne.s32.totalorder %s64, %s67
      %p76 = scmp.eq.s32.totalorder %s21, 1
      %p77 = por %p75, %p76
      %p78 = scmp.ne.s32.totalorder %s67, %s68
      %p79 = scmp.eq.s32.totalorder %s21, 0
      %p80 = por %p78, %p79
      %p81 = scmp.ne.s32.totalorder %s67, %s68
      %p82 = scmp.eq.s32.totalorder %s22, 1
      %p83 = por %p81, %p82
      %p85 = scmp.ne.s32.totalorder %s68, %s84
      %p86 = scmp.eq.s32.totalorder %s22, 0
      %p87 = por %p85, %p86
      %s88 = ssub.s32 %s24, %s31
      %p89 = scmp.eq.s32.totalorder %s88, 0
      %s91 = sadd.s32 %s90, 1
      %s92 = scalar_select %p89, %s90, %s91
      %p95 = pneg %p89
      %p96 = scmp.eq.s32.totalorder %s16, 1
      %p97 = por %p95, %p96
      %p98 = scmp.ne.s32.totalorder %s90, %s93
      %p99 = scmp.eq.s32.totalorder %s16, 0
      %p100 = por %p98, %p99
      %p101 = scmp.ne.s32.totalorder %s90, %s93
      %p102 = scmp.eq.s32.totalorder %s21, 1
      %p103 = por %p101, %p102
      %p104 = scmp.ne.s32.totalorder %s93, %s94
      %p105 = scmp.eq.s32.totalorder %s21, 0
      %p106 = por %p104, %p105
      %p107 = scmp.ne.s32.totalorder %s93, %s94
      %p108 = scmp.eq.s32.totalorder %s22, 1
      %p109 = por %p107, %p108
      %p111 = scmp.ne.s32.totalorder %s94, %s110
      %p112 = scmp.eq.s32.totalorder %s22, 0
      %p113 = por %p111, %p112
      %s114 = ssub.s32 %s24, %s31
      %p115 = scmp.eq.s32.totalorder %s114, 0
      %s117 = sadd.s32 %s116, 1
      %s118 = scalar_select %p115, %s116, %s117
      %p121 = pneg %p115
      %p122 = scmp.eq.s32.totalorder %s16, 1
      %p123 = por %p121, %p122
      %p124 = scmp.ne.s32.totalorder %s116, %s119
      %p125 = scmp.eq.s32.totalorder %s16, 0
      %p126 = por %p124, %p125
      %p127 = scmp.ne.s32.totalorder %s116, %s119
      %p128 = scmp.eq.s32.totalorder %s21, 1
      %p129 = por %p127, %p128
      %p130 = scmp.ne.s32.totalorder %s119, %s120
      %p131 = scmp.eq.s32.totalorder %s21, 0
      %p132 = por %p130, %p131
      %p133 = scmp.ne.s32.totalorder %s119, %s120
      %p134 = scmp.eq.s32.totalorder %s22, 1
      %p135 = por %p133, %p134
      %p137 = scmp.ne.s32.totalorder %s120, %s136
      %p138 = scmp.eq.s32.totalorder %s22, 0
      %p139 = por %p137, %p138
      %s140 = ssub.s32 %s24, %s31
      %p141 = scmp.eq.s32.totalorder %s140, 0
      %s143 = sadd.s32 %s142, 1
      %s144 = scalar_select %p141, %s142, %s143
      %p147 = pneg %p141
      %p148 = scmp.eq.s32.totalorder %s16, 1
      %p149 = por %p147, %p148
      %p150 = scmp.ne.s32.totalorder %s142, %s145
      %p151 = scmp.eq.s32.totalorder %s16, 0
      %p152 = por %p150, %p151
      %p153 = scmp.ne.s32.totalorder %s142, %s145
      %p154 = scmp.eq.s32.totalorder %s21, 1
      %p155 = por %p153, %p154
      %p156 = scmp.ne.s32.totalorder %s145, %s146
      %p157 = scmp.eq.s32.totalorder %s21, 0
      %p158 = por %p156, %p157
      %p159 = scmp.ne.s32.totalorder %s145, %s146
      %p160 = scmp.eq.s32.totalorder %s22, 1
      %p161 = por %p159, %p160
      %p163 = scmp.ne.s32.totalorder %s146, %s162
      %p164 = scmp.eq.s32.totalorder %s22, 0
      %p165 = por %p163, %p164
      %s166 = ssub.s32 %s24, %s31
      %p167 = scmp.eq.s32.totalorder %s166, 0
      %s169 = sadd.s32 %s168, 1
      %s170 = scalar_select %p167, %s168, %s169
      %p173 = pneg %p167
      %p174 = scmp.eq.s32.totalorder %s16, 1
      %p175 = por %p173, %p174
      %p176 = scmp.ne.s32.totalorder %s168, %s171
      %p177 = scmp.eq.s32.totalorder %s16, 0
      %p178 = por %p176, %p177
      %p179 = scmp.ne.s32.totalorder %s168, %s171
      %p180 = scmp.eq.s32.totalorder %s21, 1
      %p181 = por %p179, %p180
      %p182 = scmp.ne.s32.totalorder %s171, %s172
      %p183 = scmp.eq.s32.totalorder %s21, 0
      %p184 = por %p182, %p183
      %p185 = scmp.ne.s32.totalorder %s171, %s172
      %p186 = scmp.eq.s32.totalorder %s22, 1
      %p187 = por %p185, %p186
      %p189 = scmp.ne.s32.totalorder %s172, %s188
      %p190 = scmp.eq.s32.totalorder %s22, 0
      %p191 = por %p189, %p190
      %s192 = ssub.s32 %s24, %s31
      %p193 = scmp.eq.s32.totalorder %s192, 0
      %s195 = sadd.s32 %s194, 1
      %s196 = scalar_select %p193, %s194, %s195
      %p199 = pneg %p193
      %p200 = scmp.eq.s32.totalorder %s16, 1
      %p201 = por %p199, %p200
      %p202 = scmp.ne.s32.totalorder %s194, %s197
      %p203 = scmp.eq.s32.totalorder %s16, 0
      %p204 = por %p202, %p203
      %p205 = scmp.ne.s32.totalorder %s194, %s197
      %p206 = scmp.eq.s32.totalorder %s21, 1
      %p207 = por %p205, %p206
      %p208 = scmp.ne.s32.totalorder %s197, %s198
      %p209 = scmp.eq.s32.totalorder %s21, 0
      %p210 = por %p208, %p209
      %p211 = scmp.ne.s32.totalorder %s197, %s198
      %p212 = scmp.eq.s32.totalorder %s22, 1
      %p213 = por %p211, %p212
      %p215 = scmp.ne.s32.totalorder %s198, %s214
      %p216 = scmp.eq.s32.totalorder %s22, 0
      %p217 = por %p215, %p216
      %s218 = ssub.s32 %s23, %s35
      %p219 = scmp.eq.s32.totalorder %s218, 0
      %s221 = sadd.s32 %s220, 1
      %s222 = scalar_select %p219, %s220, %s221
      %p225 = pneg %p219
      %p226 = scmp.eq.s32.totalorder %s16, 1
      %p227 = por %p225, %p226
      %p228 = scmp.ne.s32.totalorder %s220, %s223
      %p229 = scmp.eq.s32.totalorder %s16, 0
      %p230 = por %p228, %p229
      %p231 = scmp.ne.s32.totalorder %s220, %s223
      %p232 = scmp.eq.s32.totalorder %s21, 1
      %p233 = por %p231, %p232
      %p234 = scmp.ne.s32.totalorder %s223, %s224
      %p235 = scmp.eq.s32.totalorder %s21, 0
      %p236 = por %p234, %p235
      %p237 = scmp.ne.s32.totalorder %s223, %s224
      %p238 = scmp.eq.s32.totalorder %s22, 1
      %p239 = por %p237, %p238
      %p241 = scmp.ne.s32.totalorder %s224, %s240
      %p242 = scmp.eq.s32.totalorder %s22, 0
      %p243 = por %p241, %p242
      %p244 = scmp.le.s32.totalorder 1, %s16
      %p245 = scmp.lt.s32.totalorder %s16, 3
      %p246 = pnand %p244, %p245
      %p247 = pneg %p246
      // Predicated region
      $region9: #{tpu_custom_call.1} parent=5 // pred_check
        _
      $region10: #{tpu_custom_call.1} parent=5 // pred_check_branch
        %249 = sbr.rel (%p246) target = $region12
      $region11: #{tpu_custom_call.1} parent=5 // pred_region
        %s250 = ssub.s32 %s16, 1
        // Predicated region
        $region13: #{tpu_custom_call.1} parent=11 // pred_check
          %p251 = pneg %p54
        $region14: #{tpu_custom_call.1} parent=11 // pred_check_branch
          %253 = sbr.rel (%p251) target = $region16
        $region15: #{tpu_custom_call.1} parent=11 // pred_region
          %s254 = smul.u32 2, %s25
          %s256 = ssub.s32 256, 256
          %257 = vsyncadd [#allocation4], %s256
          %s258 = smul.addr %s254, 128
          %s259 = scalar_lea.hbm %s0, %s258
          %s260 = sshll.u32 [#allocation3], 4
          %s261 = int_to_ptr.vmem [resolvable:$true] %s260
          %266 = dma.hbm_to_vmem [thread:$0]  %s259, 256, %s261, [#allocation4], 128, 128, 8
        $region16: #{tpu_custom_call.1} parent=11 // pred_fallthru
          _
        // Predicated region
        $region17: #{tpu_custom_call.1} parent=11 // pred_check
          %p267 = pneg %p80
        $region18: #{tpu_custom_call.1} parent=11 // pred_check_branch
          %269 = sbr.rel (%p267) target = $region20
        $region19: #{tpu_custom_call.1} parent=11 // pred_region
          %s270 = smul.u32 2, %s25
          %s272 = ssub.s32 32, 32
          %273 = vsyncadd [#allocation7], %s272
          %s274 = smul.addr %s270, 16
          %s275 = scalar_lea.hbm %s1, %s274
          %s276 = sshll.u32 [#allocation6], 4
          %s277 = int_to_ptr.vmem [resolvable:$true] %s276
          %282 = dma.hbm_to_vmem [thread:$0]  %s275, 32, %s277, [#allocation7], 16, 16, 1
        $region20: #{tpu_custom_call.1} parent=11 // pred_fallthru
          _
      $region12: #{tpu_custom_call.1} parent=5 // pred_fallthru
        _
      %p283 = scmp.lt.s32.totalorder %s16, 2
      // Predicated region
      $region21: #{tpu_custom_call.1} parent=5 // pred_check
        %p284 = pneg %p283
      $region22: #{tpu_custom_call.1} parent=5 // pred_check_branch
        %286 = sbr.rel (%p284) target = $region24
      $region23: #{tpu_custom_call.1} parent=5 // pred_region
        // Predicated region
        $region25: #{tpu_custom_call.1} parent=23 // pred_check
          %p287 = pneg %p100
        $region26: #{tpu_custom_call.1} parent=23 // pred_check_branch
          %289 = sbr.rel (%p287) target = $region28
        $region27: #{tpu_custom_call.1} parent=23 // pred_region
          %p290 = scmp.lt.s32.totalorder %s24, 1
          %s291 = scalar_select %p290, %s24, 1
          %s292 = smul.addr %s291, 4
          %s293 = smul.addr %s292, 4
          %s294 = scalar_lea.vmem %s2, %s293
        $region28: #{tpu_custom_call.1} parent=23 // pred_fallthru
          _
        // Predicated region
        $region29: #{tpu_custom_call.1} parent=23 // pred_check
          %p295 = pneg %p126
        $region30: #{tpu_custom_call.1} parent=23 // pred_check_branch
          %297 = sbr.rel (%p295) target = $region32
        $region31: #{tpu_custom_call.1} parent=23 // pred_region
          %p298 = scmp.lt.s32.totalorder %s24, 1
          %s299 = scalar_select %p298, %s24, 1
          %s300 = smul.addr %s299, 4
          %s301 = smul.addr %s300, 4
          %s302 = scalar_lea.vmem %s3, %s301
        $region32: #{tpu_custom_call.1} parent=23 // pred_fallthru
          _
        // Predicated region
        $region33: #{tpu_custom_call.1} parent=23 // pred_check
          %p303 = pneg %p152
        $region34: #{tpu_custom_call.1} parent=23 // pred_check_branch
          %305 = sbr.rel (%p303) target = $region36
        $region35: #{tpu_custom_call.1} parent=23 // pred_region
          %p306 = scmp.lt.s32.totalorder %s24, 1
          %s307 = scalar_select %p306, %s24, 1
          %s308 = smul.addr %s307, 4
          %s309 = smul.addr %s308, 4
          %s310 = scalar_lea.vmem %s4, %s309
        $region36: #{tpu_custom_call.1} parent=23 // pred_fallthru
          _
        // Predicated region
        $region37: #{tpu_custom_call.1} parent=23 // pred_check
          %p311 = pneg %p178
        $region38: #{tpu_custom_call.1} parent=23 // pred_check_branch
          %313 = sbr.rel (%p311) target = $region40
        $region39: #{tpu_custom_call.1} parent=23 // pred_region
          %p314 = scmp.lt.s32.totalorder %s24, 1
          %s315 = scalar_select %p314, %s24, 1
          %s316 = smul.addr %s315, 8
          %s317 = smul.addr %s316, 4
          %s318 = scalar_lea.vmem %s5, %s317
        $region40: #{tpu_custom_call.1} parent=23 // pred_fallthru
          _
        // Predicated region
        $region41: #{tpu_custom_call.1} parent=23 // pred_check
          %p319 = pneg %p204
        $region42: #{tpu_custom_call.1} parent=23 // pred_check_branch
          %321 = sbr.rel (%p319) target = $region44
        $region43: #{tpu_custom_call.1} parent=23 // pred_region
          %p322 = scmp.lt.s32.totalorder %s24, 1
          %s323 = scalar_select %p322, %s24, 1
          %s324 = smul.addr %s323, 3
          %s325 = scalar_lea.vmem %s6, %s324
        $region44: #{tpu_custom_call.1} parent=23 // pred_fallthru
          _
      $region24: #{tpu_custom_call.1} parent=5 // pred_fallthru
        _
      %p326 = scmp.le.s32.totalorder 1, %s16
      %p327 = scmp.lt.s32.totalorder %s16, 3
      %p328 = pnand %p326, %p327
      %p329 = pneg %p328
      // Predicated region
      $region45: #{tpu_custom_call.1} parent=5 // pred_check
        _
      $region46: #{tpu_custom_call.1} parent=5 // pred_check_branch
        %331 = sbr.rel (%p328) target = $region48
      $region47: #{tpu_custom_call.1} parent=5 // pred_region
        %s332 = ssub.s32 %s16, 1
        // Predicated region
        $region49: #{tpu_custom_call.1} parent=47 // pred_check
          %p333 = pneg %p54
        $region50: #{tpu_custom_call.1} parent=47 // pred_check_branch
          %335 = sbr.rel (%p333) target = $region52
        $region51: #{tpu_custom_call.1} parent=47 // pred_region
          %336 = dma.done [#allocation4], 256
        $region52: #{tpu_custom_call.1} parent=47 // pred_fallthru
          _
        // Predicated region
        $region53: #{tpu_custom_call.1} parent=47 // pred_check
          %p337 = pneg %p80
        $region54: #{tpu_custom_call.1} parent=47 // pred_check_branch
          %339 = sbr.rel (%p337) target = $region56
        $region55: #{tpu_custom_call.1} parent=47 // pred_region
          %340 = dma.done [#allocation7], 32
        $region56: #{tpu_custom_call.1} parent=47 // pred_fallthru
          _
        %p341 = pneg %p54
        %p342 = pneg %p51
        %p343 = pneg %p80
        %p344 = pneg %p77
        %p345 = scmp.lt.s32.totalorder %s26, 1
        %s346 = scalar_select %p345, %s26, 1
        %s347 = smul.addr %s346, 4
        %s348 = smul.addr %s347, 4
        %s349 = scalar_lea.vmem %s2, %s348
        %p350 = pneg %p106
        %p351 = pneg %p103
        %p352 = scmp.lt.s32.totalorder %s26, 1
        %s353 = scalar_select %p352, %s26, 1
        %s354 = smul.addr %s353, 4
        %s355 = smul.addr %s354, 4
        %s356 = scalar_lea.vmem %s3, %s355
        %p357 = pneg %p132
        %p358 = pneg %p129
        %p359 = scmp.lt.s32.totalorder %s26, 1
        %s360 = scalar_select %p359, %s26, 1
        %s361 = smul.addr %s360, 4
        %s362 = smul.addr %s361, 4
        %s363 = scalar_lea.vmem %s4, %s362
        %p364 = pneg %p158
        %p365 = pneg %p155
        %p366 = scmp.lt.s32.totalorder %s26, 1
        %s367 = scalar_select %p366, %s26, 1
        %s368 = smul.addr %s367, 8
        %s369 = smul.addr %s368, 4
        %s370 = scalar_lea.vmem %s5, %s369
        %p371 = pneg %p184
        %p372 = pneg %p181
        %p373 = scmp.lt.s32.totalorder %s26, 1
        %s374 = scalar_select %p373, %s26, 1
        %s375 = smul.addr %s374, 3
        %s376 = scalar_lea.vmem %s6, %s375
        %p377 = pneg %p210
        %p378 = pneg %p207
        %p379 = pneg %p236
        %p380 = pneg %p233
        %s381 = smul.u32 2, %s25
        %s382 = smul.u32 2, %s25
        %p383 = scmp.lt.s32.totalorder %s26, 1
        %s384 = scalar_select %p383, %s26, 1
        %s385 = smul.addr %s384, 4
        %s386 = smul.addr %s385, 4
        %s387 = scalar_lea.vmem %s2, %s386
        %p388 = scmp.lt.s32.totalorder %s26, 1
        %s389 = scalar_select %p388, %s26, 1
        %s390 = smul.addr %s389, 4
        %s391 = smul.addr %s390, 4
        %s392 = scalar_lea.vmem %s3, %s391
        %p393 = scmp.lt.s32.totalorder %s26, 1
        %s394 = scalar_select %p393, %s26, 1
        %s395 = smul.addr %s394, 4
        %s396 = smul.addr %s395, 4
        %s397 = scalar_lea.vmem %s4, %s396
        %p398 = scmp.lt.s32.totalorder %s26, 1
        %s399 = scalar_select %p398, %s26, 1
        %s400 = smul.addr %s399, 8
        %s401 = smul.addr %s400, 4
        %s402 = scalar_lea.vmem %s5, %s401
        %p403 = scmp.lt.s32.totalorder %s26, 1
        %s404 = scalar_select %p403, %s26, 1
        %s405 = smul.addr %s404, 3
        %s406 = scalar_lea.vmem %s6, %s405
        %s407 = smul.u32 2, %s25
        %p409 = scmp.eq.s32.totalorder %s26, 0
        // Predicated region
        $region57: #{tpu_custom_call.1} parent=47 // pred_check
          %p410 = pneg %p409
        $region58: #{tpu_custom_call.1} parent=47 // pred_check_branch
          %412 = sbr.rel (%p410) target = $region60
        $region59: #{tpu_custom_call.1} parent=47 // pred_region
          %v413 = vld [vmem:[#allocation3] sm:$0xff]
          %v414 = vld [vmem:[#allocation3 + $0x8] sm:$0xff]
          %vm415 = vcmask 261120
          %416 = vst.msk [vmem:[#allocation2] sm:$0xff] %vm415, %v413
          %417 = vst.msk [vmem:[#allocation2 + $0x8] sm:$0xff] %vm415, %v414
        $region60: #{tpu_custom_call.1} parent=47 // pred_fallthru
          _
        %v418 = vld [vmem:[#allocation2] sm:$0xff]
        %v419 = vld [vmem:[#allocation2 + $0x8] sm:$0xff]
        %v420 = vpack.c.bf16 %v419, %v418
        %v421 = vld [vmem:[%s406] sm:$0x7]
        %v422 = vld [vmem:[%s387] sm:$0xf]
        %v423 = vld [vmem:[%s387 + $0x4] sm:$0xf]
        %v424 = vld [vmem:[%s387 + $0x8] sm:$0xf]
        %v425 = vld [vmem:[%s387 + $0xc] sm:$0xf]
        %v427 = vlaneseq
        %v428 = vshrl.u32 %v427, 7
        %v429 = vsub.s32 0, %v428
        %v430 = vrot.slane %v421, %v429
        %v436 = vunpack.c.l.b16 %v422
        %v437 = vunpack.c.l.b16 %v423
        %v438 = vunpack.c.l.b16 %v424
        %v439 = vunpack.c.l.b16 %v425
        %v440 = vpack.c.b16 %v437, %v436
        %v441 = vpack.c.b16 %v439, %v438
        %vm444 = vcmask 261120
        %v446 = vsel %vm444, %v420, 0
        %448 = vmatprep.subr.bf16.mxu0 0
        %449 = vmatpush1.bf16.msra.mxu0 0
        %450 = vmatprep.subr.bf16.mxu0 0
        %451 = vmatpush1.bf16.msra.mxu0 0
        %452 = vmatprep.subr.bf16.mxu0 0
        %453 = vmatpush1.bf16.msra.mxu0 0
        %454 = vmatprep.subr.bf16.mxu0 0
        %455 = vmatpush1.bf16.msra.mxu0 0
        %456 = vmatprep.subr.bf16.mxu0 0
        %457 = vmatpush1.bf16.msra.mxu0 0
        %458 = vmatprep.subr.bf16.mxu0 0
        %459 = vmatpush1.bf16.msra.mxu0 0
        %460 = vmatprep.subr.bf16.mxu0 0
        %461 = vmatpush1.bf16.msra.mxu0 %v441
        %462 = vmatprep.subr.bf16.mxu0 0
        %463 = vmatpush1.bf16.msra.mxu0 %v440
        %464 = vmatprep.subr.bf16.mxu0 0
        %465 = vmatpush2.bf16.msra.mxu0 0
        %466 = vmatprep.subr.bf16.mxu0 0
        %467 = vmatpush2.bf16.msra.mxu0 0
        %468 = vmatprep.subr.bf16.mxu0 0
        %469 = vmatpush2.bf16.msra.mxu0 0
        %470 = vmatprep.subr.bf16.mxu0 0
        %471 = vmatpush2.bf16.msra.mxu0 0
        %472 = vmatprep.subr.bf16.mxu0 0
        %473 = vmatpush2.bf16.msra.mxu0 0
        %474 = vmatprep.subr.bf16.mxu0 0
        %475 = vmatpush2.bf16.msra.mxu0 0
        %476 = vmatprep.subr.bf16.mxu0 0
        %477 = vmatpush2.bf16.msra.mxu0 0
        %478 = vmatprep.subr.bf16.mxu0 0
        %479 = vmatpush2.bf16.msra.mxu0 0
        %480 = vmatprep.mubr.bf16.mxu0 0
        %481 = vmatmul.mubr.bf16.gmra.mxu0 %v446
        %v482 = vpop.f32.mrf.mxu0
        %v483 = vadd.f32 %v430, %v482
        %v484 = vpop.f32.mrf.mxu0
        %v485 = vpop.f32.mrf.mxu0
        %v486 = vadd.f32 %v430, %v485
        %v487 = vpop.f32.mrf.mxu0
        %488 = vdwg.mxu0
        %v489 = vpack.c.bf16 %v486, %v483
        %491 = vrot.lane.b32.xlu0 %v489, 120
        %v492 = vpop.permute.xlu0 %491
        %493 = vrot.lane.b32.xlu0 %v489, 112
        %v494 = vpop.permute.xlu0 %493
        %495 = vrot.lane.b32.xlu0 %v489, 104
        %v496 = vpop.permute.xlu0 %495
        %v499 = vpack.i.b16 %v492, %v489
        %v501 = vshrl.u32 %v489, 16
        %v502 = vshrl.u32 %v492, 16
        %v503 = vpack.i.b16 %v502, %v501
        %v507 = vpack.i.b16 %v496, %v494
        %v509 = vshrl.u32 %v494, 16
        %v510 = vshrl.u32 %v496, 16
        %v511 = vpack.i.b16 %v510, %v509
        %v514 = vpack.i.b16 0, 0
        %v516 = vshrl.u32 0, 16
        %v517 = vpack.i.b16 %v516, %v516
        %v519 = vcombine.high %v499, %v514
        %v521 = vunpack.c.l.s4 1983009808
        %v522 = vunpack.c.0.s8 %v521
        %v523 = vlaneseq
        %v524 = vshrl.u32 %v523, 7
        %v525 = vsub.s32 %v522, %v524
        %v526 = vrot.slane %v499, %v525
        %v528 = vunpack.c.l.s4 1983009808
        %v529 = vunpack.c.0.s8 %v528
        %v530 = vlaneseq
        %v531 = vshrl.u32 %v530, 7
        %v532 = vsub.s32 %v529, %v531
        %v533 = vrot.slane %v519, %v532
        %v534 = vcombine.high %v507, %v514
        %v536 = vunpack.c.l.s4 1983009808
        %v537 = vunpack.c.0.s8 %v536
        %v538 = vlaneseq
        %v539 = vshrl.u32 %v538, 7
        %v540 = vsub.s32 %v537, %v539
        %v541 = vrot.slane %v507, %v540
        %v543 = vunpack.c.l.s4 1983009808
        %v544 = vunpack.c.0.s8 %v543
        %v545 = vlaneseq
        %v546 = vshrl.u32 %v545, 7
        %v547 = vsub.s32 %v544, %v546
        %v548 = vrot.slane %v534, %v547
        %v549 = vcombine.low %v526, %v541
        %v550 = vcombine.high %v526, %v541
        %v552 = vunpack.c.l.s4 1934713408
        %v553 = vunpack.c.0.s8 %v552
        %v554 = vlaneseq
        %v555 = vshrl.u32 %v554, 7
        %v556 = vsub.s32 %v553, %v555
        %v557 = vrot.slane %v549, %v556
        %v559 = vunpack.c.l.s4 1934713408
        %v560 = vunpack.c.0.s8 %v559
        %v561 = vlaneseq
        %v562 = vshrl.u32 %v561, 7
        %v563 = vsub.s32 %v560, %v562
        %v564 = vrot.slane %v550, %v563
        %v565 = vcombine.low %v533, %v548
        %v566 = vcombine.high %v533, %v548
        %v568 = vunpack.c.l.s4 1934713408
        %v569 = vunpack.c.0.s8 %v568
        %v570 = vlaneseq
        %v571 = vshrl.u32 %v570, 7
        %v572 = vsub.s32 %v569, %v571
        %v573 = vrot.slane %v565, %v572
        %v575 = vunpack.c.l.s4 1934713408
        %v576 = vunpack.c.0.s8 %v575
        %v577 = vlaneseq
        %v578 = vshrl.u32 %v577, 7
        %v579 = vsub.s32 %v576, %v578
        %v580 = vrot.slane %v566, %v579
        %v581 = vcombine.high %v557, 0
        %v582 = vcombine.high %v564, 0
        %v583 = vcombine.high %v573, 0
        %v584 = vcombine.high %v580, 0
        %v585 = vcombine.high %v503, %v517
        %v587 = vunpack.c.l.s4 1983009808
        %v588 = vunpack.c.0.s8 %v587
        %v589 = vlaneseq
        %v590 = vshrl.u32 %v589, 7
        %v591 = vsub.s32 %v588, %v590
        %v592 = vrot.slane %v503, %v591
        %v594 = vunpack.c.l.s4 1983009808
        %v595 = vunpack.c.0.s8 %v594
        %v596 = vlaneseq
        %v597 = vshrl.u32 %v596, 7
        %v598 = vsub.s32 %v595, %v597
        %v599 = vrot.slane %v585, %v598
        %v600 = vcombine.high %v511, %v517
        %v602 = vunpack.c.l.s4 1983009808
        %v603 = vunpack.c.0.s8 %v602
        %v604 = vlaneseq
        %v605 = vshrl.u32 %v604, 7
        %v606 = vsub.s32 %v603, %v605
        %v607 = vrot.slane %v511, %v606
        %v609 = vunpack.c.l.s4 1983009808
        %v610 = vunpack.c.0.s8 %v609
        %v611 = vlaneseq
        %v612 = vshrl.u32 %v611, 7
        %v613 = vsub.s32 %v610, %v612
        %v614 = vrot.slane %v600, %v613
        %v615 = vcombine.low %v592, %v607
        %v616 = vcombine.high %v592, %v607
        %v618 = vunpack.c.l.s4 1934713408
        %v619 = vunpack.c.0.s8 %v618
        %v620 = vlaneseq
        %v621 = vshrl.u32 %v620, 7
        %v622 = vsub.s32 %v619, %v621
        %v623 = vrot.slane %v615, %v622
        %v625 = vunpack.c.l.s4 1934713408
        %v626 = vunpack.c.0.s8 %v625
        %v627 = vlaneseq
        %v628 = vshrl.u32 %v627, 7
        %v629 = vsub.s32 %v626, %v628
        %v630 = vrot.slane %v616, %v629
        %v631 = vcombine.low %v599, %v614
        %v632 = vcombine.high %v599, %v614
        %v634 = vunpack.c.l.s4 1934713408
        %v635 = vunpack.c.0.s8 %v634
        %v636 = vlaneseq
        %v637 = vshrl.u32 %v636, 7
        %v638 = vsub.s32 %v635, %v637
        %v639 = vrot.slane %v631, %v638
        %v641 = vunpack.c.l.s4 1934713408
        %v642 = vunpack.c.0.s8 %v641
        %v643 = vlaneseq
        %v644 = vshrl.u32 %v643, 7
        %v645 = vsub.s32 %v642, %v644
        %v646 = vrot.slane %v632, %v645
        %v647 = vcombine.high %v623, 0
        %v648 = vcombine.high %v630, 0
        %v649 = vcombine.high %v639, 0
        %v650 = vcombine.high %v646, 0
        %v651 = vcombine.low %v557, %v564
        %v653 = vunpack.c.l.s4 1983009808
        %v654 = vunpack.c.0.s8 %v653
        %v655 = vlaneseq
        %v656 = vshrl.u32 %v655, 7
        %v657 = vsub.s32 %v654, %v656
        %v658 = vrot.slane %v651, %v657
        %v659 = vcombine.low %v581, %v582
        %v661 = vunpack.c.l.s4 1983009808
        %v662 = vunpack.c.0.s8 %v661
        %v663 = vlaneseq
        %v664 = vshrl.u32 %v663, 7
        %v665 = vsub.s32 %v662, %v664
        %v666 = vrot.slane %v659, %v665
        %v667 = vcombine.low %v658, %v666
        %v669 = vunpack.c.l.s4 1934713408
        %v670 = vunpack.c.0.s8 %v669
        %v671 = vlaneseq
        %v672 = vshrl.u32 %v671, 7
        %v673 = vsub.s32 %v670, %v672
        %v674 = vrot.slane %v667, %v673
        %v675 = vcombine.high %v674, 0
        %v676 = vcombine.low %v623, %v630
        %v678 = vunpack.c.l.s4 1983009808
        %v679 = vunpack.c.0.s8 %v678
        %v680 = vlaneseq
        %v681 = vshrl.u32 %v680, 7
        %v682 = vsub.s32 %v679, %v681
        %v683 = vrot.slane %v676, %v682
        %v684 = vcombine.low %v647, %v648
        %v686 = vunpack.c.l.s4 1983009808
        %v687 = vunpack.c.0.s8 %v686
        %v688 = vlaneseq
        %v689 = vshrl.u32 %v688, 7
        %v690 = vsub.s32 %v687, %v689
        %v691 = vrot.slane %v684, %v690
        %v692 = vcombine.low %v683, %v691
        %v694 = vunpack.c.l.s4 1934713408
        %v695 = vunpack.c.0.s8 %v694
        %v696 = vlaneseq
        %v697 = vshrl.u32 %v696, 7
        %v698 = vsub.s32 %v695, %v697
        %v699 = vrot.slane %v692, %v698
        %v700 = vcombine.high %v699, 0
        %v701 = vcombine.low %v573, %v580
        %v703 = vunpack.c.l.s4 1983009808
        %v704 = vunpack.c.0.s8 %v703
        %v705 = vlaneseq
        %v706 = vshrl.u32 %v705, 7
        %v707 = vsub.s32 %v704, %v706
        %v708 = vrot.slane %v701, %v707
        %v709 = vcombine.low %v583, %v584
        %v711 = vunpack.c.l.s4 1983009808
        %v712 = vunpack.c.0.s8 %v711
        %v713 = vlaneseq
        %v714 = vshrl.u32 %v713, 7
        %v715 = vsub.s32 %v712, %v714
        %v716 = vrot.slane %v709, %v715
        %v717 = vcombine.low %v708, %v716
        %v719 = vunpack.c.l.s4 1934713408
        %v720 = vunpack.c.0.s8 %v719
        %v721 = vlaneseq
        %v722 = vshrl.u32 %v721, 7
        %v723 = vsub.s32 %v720, %v722
        %v724 = vrot.slane %v717, %v723
        %v725 = vcombine.high %v724, 0
        %v726 = vcombine.low %v639, %v646
        %v728 = vunpack.c.l.s4 1983009808
        %v729 = vunpack.c.0.s8 %v728
        %v730 = vlaneseq
        %v731 = vshrl.u32 %v730, 7
        %v732 = vsub.s32 %v729, %v731
        %v733 = vrot.slane %v726, %v732
        %v734 = vcombine.low %v649, %v650
        %v736 = vunpack.c.l.s4 1983009808
        %v737 = vunpack.c.0.s8 %v736
        %v738 = vlaneseq
        %v739 = vshrl.u32 %v738, 7
        %v740 = vsub.s32 %v737, %v739
        %v741 = vrot.slane %v734, %v740
        %v742 = vcombine.low %v733, %v741
        %v744 = vunpack.c.l.s4 1934713408
        %v745 = vunpack.c.0.s8 %v744
        %v746 = vlaneseq
        %v747 = vshrl.u32 %v746, 7
        %v748 = vsub.s32 %v745, %v747
        %v749 = vrot.slane %v742, %v748
        %v750 = vcombine.high %v749, 0
        %v753 = vpack.i.b16 %v699, %v674
        %v754 = vshrl.u32 %v674, 16
        %v755 = vshrl.u32 %v699, 16
        %v756 = vpack.i.b16 %v755, %v754
        %v759 = vpack.i.b16 %v700, %v675
        %v760 = vshrl.u32 %v675, 16
        %v761 = vshrl.u32 %v700, 16
        %v762 = vpack.i.b16 %v761, %v760
        %v765 = vpack.i.b16 %v749, %v724
        %v766 = vshrl.u32 %v724, 16
        %v767 = vshrl.u32 %v749, 16
        %v768 = vpack.i.b16 %v767, %v766
        %v771 = vpack.i.b16 %v750, %v725
        %v772 = vshrl.u32 %v725, 16
        %v773 = vshrl.u32 %v750, 16
        %v774 = vpack.i.b16 %v773, %v772
        %775 = vrot.lane.b32.xlu0 %v489, 96
        %v776 = vpop.permute.xlu0 %775
        %777 = vrot.lane.b32.xlu0 %v492, 96
        %v778 = vpop.permute.xlu0 %777
        %779 = vrot.lane.b32.xlu0 %v494, 96
        %v780 = vpop.permute.xlu0 %779
        %781 = vrot.lane.b32.xlu0 %v496, 96
        %v782 = vpop.permute.xlu0 %781
        %v785 = vpack.i.b16 %v778, %v776
        %v787 = vshrl.u32 %v776, 16
        %v788 = vshrl.u32 %v778, 16
        %v789 = vpack.i.b16 %v788, %v787
        %v793 = vpack.i.b16 %v782, %v780
        %v795 = vshrl.u32 %v780, 16
        %v796 = vshrl.u32 %v782, 16
        %v797 = vpack.i.b16 %v796, %v795
        %v799 = vcombine.high %v785, %v514
        %v801 = vunpack.c.l.s4 1983009808
        %v802 = vunpack.c.0.s8 %v801
        %v803 = vlaneseq
        %v804 = vshrl.u32 %v803, 7
        %v805 = vsub.s32 %v802, %v804
        %v806 = vrot.slane %v785, %v805
        %v808 = vunpack.c.l.s4 1983009808
        %v809 = vunpack.c.0.s8 %v808
        %v810 = vlaneseq
        %v811 = vshrl.u32 %v810, 7
        %v812 = vsub.s32 %v809, %v811
        %v813 = vrot.slane %v799, %v812
        %v814 = vcombine.high %v793, %v514
        %v816 = vunpack.c.l.s4 1983009808
        %v817 = vunpack.c.0.s8 %v816
        %v818 = vlaneseq
        %v819 = vshrl.u32 %v818, 7
        %v820 = vsub.s32 %v817, %v819
        %v821 = vrot.slane %v793, %v820
        %v823 = vunpack.c.l.s4 1983009808
        %v824 = vunpack.c.0.s8 %v823
        %v825 = vlaneseq
        %v826 = vshrl.u32 %v825, 7
        %v827 = vsub.s32 %v824, %v826
        %v828 = vrot.slane %v814, %v827
        %v829 = vcombine.low %v806, %v821
        %v830 = vcombine.high %v806, %v821
        %v832 = vunpack.c.l.s4 1934713408
        %v833 = vunpack.c.0.s8 %v832
        %v834 = vlaneseq
        %v835 = vshrl.u32 %v834, 7
        %v836 = vsub.s32 %v833, %v835
        %v837 = vrot.slane %v829, %v836
        %v839 = vunpack.c.l.s4 1934713408
        %v840 = vunpack.c.0.s8 %v839
        %v841 = vlaneseq
        %v842 = vshrl.u32 %v841, 7
        %v843 = vsub.s32 %v840, %v842
        %v844 = vrot.slane %v830, %v843
        %v845 = vcombine.low %v813, %v828
        %v846 = vcombine.high %v813, %v828
        %v848 = vunpack.c.l.s4 1934713408
        %v849 = vunpack.c.0.s8 %v848
        %v850 = vlaneseq
        %v851 = vshrl.u32 %v850, 7
        %v852 = vsub.s32 %v849, %v851
        %v853 = vrot.slane %v845, %v852
        %v855 = vunpack.c.l.s4 1934713408
        %v856 = vunpack.c.0.s8 %v855
        %v857 = vlaneseq
        %v858 = vshrl.u32 %v857, 7
        %v859 = vsub.s32 %v856, %v858
        %v860 = vrot.slane %v846, %v859
        %v861 = vcombine.high %v837, 0
        %v862 = vcombine.high %v844, 0
        %v863 = vcombine.high %v853, 0
        %v864 = vcombine.high %v860, 0
        %v865 = vcombine.high %v789, %v517
        %v867 = vunpack.c.l.s4 1983009808
        %v868 = vunpack.c.0.s8 %v867
        %v869 = vlaneseq
        %v870 = vshrl.u32 %v869, 7
        %v871 = vsub.s32 %v868, %v870
        %v872 = vrot.slane %v789, %v871
        %v874 = vunpack.c.l.s4 1983009808
        %v875 = vunpack.c.0.s8 %v874
        %v876 = vlaneseq
        %v877 = vshrl.u32 %v876, 7
        %v878 = vsub.s32 %v875, %v877
        %v879 = vrot.slane %v865, %v878
        %v880 = vcombine.high %v797, %v517
        %v882 = vunpack.c.l.s4 1983009808
        %v883 = vunpack.c.0.s8 %v882
        %v884 = vlaneseq
        %v885 = vshrl.u32 %v884, 7
        %v886 = vsub.s32 %v883, %v885
        %v887 = vrot.slane %v797, %v886
        %v889 = vunpack.c.l.s4 1983009808
        %v890 = vunpack.c.0.s8 %v889
        %v891 = vlaneseq
        %v892 = vshrl.u32 %v891, 7
        %v893 = vsub.s32 %v890, %v892
        %v894 = vrot.slane %v880, %v893
        %v895 = vcombine.low %v872, %v887
        %v896 = vcombine.high %v872, %v887
        %v898 = vunpack.c.l.s4 1934713408
        %v899 = vunpack.c.0.s8 %v898
        %v900 = vlaneseq
        %v901 = vshrl.u32 %v900, 7
        %v902 = vsub.s32 %v899, %v901
        %v903 = vrot.slane %v895, %v902
        %v905 = vunpack.c.l.s4 1934713408
        %v906 = vunpack.c.0.s8 %v905
        %v907 = vlaneseq
        %v908 = vshrl.u32 %v907, 7
        %v909 = vsub.s32 %v906, %v908
        %v910 = vrot.slane %v896, %v909
        %v911 = vcombine.low %v879, %v894
        %v912 = vcombine.high %v879, %v894
        %v914 = vunpack.c.l.s4 1934713408
        %v915 = vunpack.c.0.s8 %v914
        %v916 = vlaneseq
        %v917 = vshrl.u32 %v916, 7
        %v918 = vsub.s32 %v915, %v917
        %v919 = vrot.slane %v911, %v918
        %v921 = vunpack.c.l.s4 1934713408
        %v922 = vunpack.c.0.s8 %v921
        %v923 = vlaneseq
        %v924 = vshrl.u32 %v923, 7
        %v925 = vsub.s32 %v922, %v924
        %v926 = vrot.slane %v912, %v925
        %v927 = vcombine.high %v903, 0
        %v928 = vcombine.high %v910, 0
        %v929 = vcombine.high %v919, 0
        %v930 = vcombine.high %v926, 0
        %v931 = vcombine.low %v837, %v844
        %v933 = vunpack.c.l.s4 1983009808
        %v934 = vunpack.c.0.s8 %v933
        %v935 = vlaneseq
        %v936 = vshrl.u32 %v935, 7
        %v937 = vsub.s32 %v934, %v936
        %v938 = vrot.slane %v931, %v937
        %v939 = vcombine.low %v861, %v862
        %v941 = vunpack.c.l.s4 1983009808
        %v942 = vunpack.c.0.s8 %v941
        %v943 = vlaneseq
        %v944 = vshrl.u32 %v943, 7
        %v945 = vsub.s32 %v942, %v944
        %v946 = vrot.slane %v939, %v945
        %v947 = vcombine.low %v938, %v946
        %v949 = vunpack.c.l.s4 1934713408
        %v950 = vunpack.c.0.s8 %v949
        %v951 = vlaneseq
        %v952 = vshrl.u32 %v951, 7
        %v953 = vsub.s32 %v950, %v952
        %v954 = vrot.slane %v947, %v953
        %v955 = vcombine.high %v954, 0
        %v956 = vcombine.low %v903, %v910
        %v958 = vunpack.c.l.s4 1983009808
        %v959 = vunpack.c.0.s8 %v958
        %v960 = vlaneseq
        %v961 = vshrl.u32 %v960, 7
        %v962 = vsub.s32 %v959, %v961
        %v963 = vrot.slane %v956, %v962
        %v964 = vcombine.low %v927, %v928
        %v966 = vunpack.c.l.s4 1983009808
        %v967 = vunpack.c.0.s8 %v966
        %v968 = vlaneseq
        %v969 = vshrl.u32 %v968, 7
        %v970 = vsub.s32 %v967, %v969
        %v971 = vrot.slane %v964, %v970
        %v972 = vcombine.low %v963, %v971
        %v974 = vunpack.c.l.s4 1934713408
        %v975 = vunpack.c.0.s8 %v974
        %v976 = vlaneseq
        %v977 = vshrl.u32 %v976, 7
        %v978 = vsub.s32 %v975, %v977
        %v979 = vrot.slane %v972, %v978
        %v980 = vcombine.high %v979, 0
        %v981 = vcombine.low %v853, %v860
        %v983 = vunpack.c.l.s4 1983009808
        %v984 = vunpack.c.0.s8 %v983
        %v985 = vlaneseq
        %v986 = vshrl.u32 %v985, 7
        %v987 = vsub.s32 %v984, %v986
        %v988 = vrot.slane %v981, %v987
        %v989 = vcombine.low %v863, %v864
        %v991 = vunpack.c.l.s4 1983009808
        %v992 = vunpack.c.0.s8 %v991
        %v993 = vlaneseq
        %v994 = vshrl.u32 %v993, 7
        %v995 = vsub.s32 %v992, %v994
        %v996 = vrot.slane %v989, %v995
        %v997 = vcombine.low %v988, %v996
        %v999 = vunpack.c.l.s4 1934713408
        %v1000 = vunpack.c.0.s8 %v999
        %v1001 = vlaneseq
        %v1002 = vshrl.u32 %v1001, 7
        %v1003 = vsub.s32 %v1000, %v1002
        %v1004 = vrot.slane %v997, %v1003
        %v1005 = vcombine.high %v1004, 0
        %v1006 = vcombine.low %v919, %v926
        %v1008 = vunpack.c.l.s4 1983009808
        %v1009 = vunpack.c.0.s8 %v1008
        %v1010 = vlaneseq
        %v1011 = vshrl.u32 %v1010, 7
        %v1012 = vsub.s32 %v1009, %v1011
        %v1013 = vrot.slane %v1006, %v1012
        %v1014 = vcombine.low %v929, %v930
        %v1016 = vunpack.c.l.s4 1983009808
        %v1017 = vunpack.c.0.s8 %v1016
        %v1018 = vlaneseq
        %v1019 = vshrl.u32 %v1018, 7
        %v1020 = vsub.s32 %v1017, %v1019
        %v1021 = vrot.slane %v1014, %v1020
        %v1022 = vcombine.low %v1013, %v1021
        %v1024 = vunpack.c.l.s4 1934713408
        %v1025 = vunpack.c.0.s8 %v1024
        %v1026 = vlaneseq
        %v1027 = vshrl.u32 %v1026, 7
        %v1028 = vsub.s32 %v1025, %v1027
        %v1029 = vrot.slane %v1022, %v1028
        %v1030 = vcombine.high %v1029, 0
        %v1033 = vpack.i.b16 %v979, %v954
        %v1034 = vshrl.u32 %v954, 16
        %v1035 = vshrl.u32 %v979, 16
        %v1036 = vpack.i.b16 %v1035, %v1034
        %v1039 = vpack.i.b16 %v980, %v955
        %v1040 = vshrl.u32 %v955, 16
        %v1041 = vshrl.u32 %v980, 16
        %v1042 = vpack.i.b16 %v1041, %v1040
        %v1045 = vpack.i.b16 %v1029, %v1004
        %v1046 = vshrl.u32 %v1004, 16
        %v1047 = vshrl.u32 %v1029, 16
        %v1048 = vpack.i.b16 %v1047, %v1046
        %v1051 = vpack.i.b16 %v1030, %v1005
        %v1052 = vshrl.u32 %v1005, 16
        %v1053 = vshrl.u32 %v1030, 16
        %v1054 = vpack.i.b16 %v1053, %v1052
        %1055 = vrot.lane.b32.xlu0 %v489, 64
        %v1056 = vpop.permute.xlu0 %1055
        %1057 = vrot.lane.b32.xlu0 %v492, 64
        %v1058 = vpop.permute.xlu0 %1057
        %1059 = vrot.lane.b32.xlu0 %v494, 64
        %v1060 = vpop.permute.xlu0 %1059
        %1061 = vrot.lane.b32.xlu0 %v496, 64
        %v1062 = vpop.permute.xlu0 %1061
        %v1065 = vpack.i.b16 %v1058, %v1056
        %v1067 = vshrl.u32 %v1056, 16
        %v1068 = vshrl.u32 %v1058, 16
        %v1069 = vpack.i.b16 %v1068, %v1067
        %v1073 = vpack.i.b16 %v1062, %v1060
        %v1075 = vshrl.u32 %v1060, 16
        %v1076 = vshrl.u32 %v1062, 16
        %v1077 = vpack.i.b16 %v1076, %v1075
        %v1079 = vcombine.high %v1065, %v514
        %v1081 = vunpack.c.l.s4 1983009808
        %v1082 = vunpack.c.0.s8 %v1081
        %v1083 = vlaneseq
        %v1084 = vshrl.u32 %v1083, 7
        %v1085 = vsub.s32 %v1082, %v1084
        %v1086 = vrot.slane %v1065, %v1085
        %v1088 = vunpack.c.l.s4 1983009808
        %v1089 = vunpack.c.0.s8 %v1088
        %v1090 = vlaneseq
        %v1091 = vshrl.u32 %v1090, 7
        %v1092 = vsub.s32 %v1089, %v1091
        %v1093 = vrot.slane %v1079, %v1092
        %v1094 = vcombine.high %v1073, %v514
        %v1096 = vunpack.c.l.s4 1983009808
        %v1097 = vunpack.c.0.s8 %v1096
        %v1098 = vlaneseq
        %v1099 = vshrl.u32 %v1098, 7
        %v1100 = vsub.s32 %v1097, %v1099
        %v1101 = vrot.slane %v1073, %v1100
        %v1103 = vunpack.c.l.s4 1983009808
        %v1104 = vunpack.c.0.s8 %v1103
        %v1105 = vlaneseq
        %v1106 = vshrl.u32 %v1105, 7
        %v1107 = vsub.s32 %v1104, %v1106
        %v1108 = vrot.slane %v1094, %v1107
        %v1109 = vcombine.low %v1086, %v1101
        %v1110 = vcombine.high %v1086, %v1101
        %v1112 = vunpack.c.l.s4 1934713408
        %v1113 = vunpack.c.0.s8 %v1112
        %v1114 = vlaneseq
        %v1115 = vshrl.u32 %v1114, 7
        %v1116 = vsub.s32 %v1113, %v1115
        %v1117 = vrot.slane %v1109, %v1116
        %v1119 = vunpack.c.l.s4 1934713408
        %v1120 = vunpack.c.0.s8 %v1119
        %v1121 = vlaneseq
        %v1122 = vshrl.u32 %v1121, 7
        %v1123 = vsub.s32 %v1120, %v1122
        %v1124 = vrot.slane %v1110, %v1123
        %v1125 = vcombine.low %v1093, %v1108
        %v1126 = vcombine.high %v1093, %v1108
        %v1128 = vunpack.c.l.s4 1934713408
        %v1129 = vunpack.c.0.s8 %v1128
        %v1130 = vlaneseq
        %v1131 = vshrl.u32 %v1130, 7
        %v1132 = vsub.s32 %v1129, %v1131
        %v1133 = vrot.slane %v1125, %v1132
        %v1135 = vunpack.c.l.s4 1934713408
        %v1136 = vunpack.c.0.s8 %v1135
        %v1137 = vlaneseq
        %v1138 = vshrl.u32 %v1137, 7
        %v1139 = vsub.s32 %v1136, %v1138
        %v1140 = vrot.slane %v1126, %v1139
        %v1141 = vcombine.high %v1117, 0
        %v1142 = vcombine.high %v1124, 0
        %v1143 = vcombine.high %v1133, 0
        %v1144 = vcombine.high %v1140, 0
        %v1145 = vcombine.high %v1069, %v517
        %v1147 = vunpack.c.l.s4 1983009808
        %v1148 = vunpack.c.0.s8 %v1147
        %v1149 = vlaneseq
        %v1150 = vshrl.u32 %v1149, 7
        %v1151 = vsub.s32 %v1148, %v1150
        %v1152 = vrot.slane %v1069, %v1151
        %v1154 = vunpack.c.l.s4 1983009808
        %v1155 = vunpack.c.0.s8 %v1154
        %v1156 = vlaneseq
        %v1157 = vshrl.u32 %v1156, 7
        %v1158 = vsub.s32 %v1155, %v1157
        %v1159 = vrot.slane %v1145, %v1158
        %v1160 = vcombine.high %v1077, %v517
        %v1162 = vunpack.c.l.s4 1983009808
        %v1163 = vunpack.c.0.s8 %v1162
        %v1164 = vlaneseq
        %v1165 = vshrl.u32 %v1164, 7
        %v1166 = vsub.s32 %v1163, %v1165
        %v1167 = vrot.slane %v1077, %v1166
        %v1169 = vunpack.c.l.s4 1983009808
        %v1170 = vunpack.c.0.s8 %v1169
        %v1171 = vlaneseq
        %v1172 = vshrl.u32 %v1171, 7
        %v1173 = vsub.s32 %v1170, %v1172
        %v1174 = vrot.slane %v1160, %v1173
        %v1175 = vcombine.low %v1152, %v1167
        %v1176 = vcombine.high %v1152, %v1167
        %v1178 = vunpack.c.l.s4 1934713408
        %v1179 = vunpack.c.0.s8 %v1178
        %v1180 = vlaneseq
        %v1181 = vshrl.u32 %v1180, 7
        %v1182 = vsub.s32 %v1179, %v1181
        %v1183 = vrot.slane %v1175, %v1182
        %v1185 = vunpack.c.l.s4 1934713408
        %v1186 = vunpack.c.0.s8 %v1185
        %v1187 = vlaneseq
        %v1188 = vshrl.u32 %v1187, 7
        %v1189 = vsub.s32 %v1186, %v1188
        %v1190 = vrot.slane %v1176, %v1189
        %v1191 = vcombine.low %v1159, %v1174
        %v1192 = vcombine.high %v1159, %v1174
        %v1194 = vunpack.c.l.s4 1934713408
        %v1195 = vunpack.c.0.s8 %v1194
        %v1196 = vlaneseq
        %v1197 = vshrl.u32 %v1196, 7
        %v1198 = vsub.s32 %v1195, %v1197
        %v1199 = vrot.slane %v1191, %v1198
        %v1201 = vunpack.c.l.s4 1934713408
        %v1202 = vunpack.c.0.s8 %v1201
        %v1203 = vlaneseq
        %v1204 = vshrl.u32 %v1203, 7
        %v1205 = vsub.s32 %v1202, %v1204
        %v1206 = vrot.slane %v1192, %v1205
        %v1207 = vcombine.high %v1183, 0
        %v1208 = vcombine.high %v1190, 0
        %v1209 = vcombine.high %v1199, 0
        %v1210 = vcombine.high %v1206, 0
        %v1211 = vcombine.low %v1117, %v1124
        %v1213 = vunpack.c.l.s4 1983009808
        %v1214 = vunpack.c.0.s8 %v1213
        %v1215 = vlaneseq
        %v1216 = vshrl.u32 %v1215, 7
        %v1217 = vsub.s32 %v1214, %v1216
        %v1218 = vrot.slane %v1211, %v1217
        %v1219 = vcombine.low %v1141, %v1142
        %v1221 = vunpack.c.l.s4 1983009808
        %v1222 = vunpack.c.0.s8 %v1221
        %v1223 = vlaneseq
        %v1224 = vshrl.u32 %v1223, 7
        %v1225 = vsub.s32 %v1222, %v1224
        %v1226 = vrot.slane %v1219, %v1225
        %v1227 = vcombine.low %v1218, %v1226
        %v1229 = vunpack.c.l.s4 1934713408
        %v1230 = vunpack.c.0.s8 %v1229
        %v1231 = vlaneseq
        %v1232 = vshrl.u32 %v1231, 7
        %v1233 = vsub.s32 %v1230, %v1232
        %v1234 = vrot.slane %v1227, %v1233
        %v1235 = vcombine.high %v1234, 0
        %v1236 = vcombine.low %v1183, %v1190
        %v1238 = vunpack.c.l.s4 1983009808
        %v1239 = vunpack.c.0.s8 %v1238
        %v1240 = vlaneseq
        %v1241 = vshrl.u32 %v1240, 7
        %v1242 = vsub.s32 %v1239, %v1241
        %v1243 = vrot.slane %v1236, %v1242
        %v1244 = vcombine.low %v1207, %v1208
        %v1246 = vunpack.c.l.s4 1983009808
        %v1247 = vunpack.c.0.s8 %v1246
        %v1248 = vlaneseq
        %v1249 = vshrl.u32 %v1248, 7
        %v1250 = vsub.s32 %v1247, %v1249
        %v1251 = vrot.slane %v1244, %v1250
        %v1252 = vcombine.low %v1243, %v1251
        %v1254 = vunpack.c.l.s4 1934713408
        %v1255 = vunpack.c.0.s8 %v1254
        %v1256 = vlaneseq
        %v1257 = vshrl.u32 %v1256, 7
        %v1258 = vsub.s32 %v1255, %v1257
        %v1259 = vrot.slane %v1252, %v1258
        %v1260 = vcombine.high %v1259, 0
        %v1261 = vcombine.low %v1133, %v1140
        %v1263 = vunpack.c.l.s4 1983009808
        %v1264 = vunpack.c.0.s8 %v1263
        %v1265 = vlaneseq
        %v1266 = vshrl.u32 %v1265, 7
        %v1267 = vsub.s32 %v1264, %v1266
        %v1268 = vrot.slane %v1261, %v1267
        %v1269 = vcombine.low %v1143, %v1144
        %v1271 = vunpack.c.l.s4 1983009808
        %v1272 = vunpack.c.0.s8 %v1271
        %v1273 = vlaneseq
        %v1274 = vshrl.u32 %v1273, 7
        %v1275 = vsub.s32 %v1272, %v1274
        %v1276 = vrot.slane %v1269, %v1275
        %v1277 = vcombine.low %v1268, %v1276
        %v1279 = vunpack.c.l.s4 1934713408
        %v1280 = vunpack.c.0.s8 %v1279
        %v1281 = vlaneseq
        %v1282 = vshrl.u32 %v1281, 7
        %v1283 = vsub.s32 %v1280, %v1282
        %v1284 = vrot.slane %v1277, %v1283
        %v1285 = vcombine.high %v1284, 0
        %v1286 = vcombine.low %v1199, %v1206
        %v1288 = vunpack.c.l.s4 1983009808
        %v1289 = vunpack.c.0.s8 %v1288
        %v1290 = vlaneseq
        %v1291 = vshrl.u32 %v1290, 7
        %v1292 = vsub.s32 %v1289, %v1291
        %v1293 = vrot.slane %v1286, %v1292
        %v1294 = vcombine.low %v1209, %v1210
        %v1296 = vunpack.c.l.s4 1983009808
        %v1297 = vunpack.c.0.s8 %v1296
        %v1298 = vlaneseq
        %v1299 = vshrl.u32 %v1298, 7
        %v1300 = vsub.s32 %v1297, %v1299
        %v1301 = vrot.slane %v1294, %v1300
        %v1302 = vcombine.low %v1293, %v1301
        %v1304 = vunpack.c.l.s4 1934713408
        %v1305 = vunpack.c.0.s8 %v1304
        %v1306 = vlaneseq
        %v1307 = vshrl.u32 %v1306, 7
        %v1308 = vsub.s32 %v1305, %v1307
        %v1309 = vrot.slane %v1302, %v1308
        %v1310 = vcombine.high %v1309, 0
        %v1313 = vpack.i.b16 %v1259, %v1234
        %v1314 = vshrl.u32 %v1234, 16
        %v1315 = vshrl.u32 %v1259, 16
        %v1316 = vpack.i.b16 %v1315, %v1314
        %v1319 = vpack.i.b16 %v1260, %v1235
        %v1320 = vshrl.u32 %v1235, 16
        %v1321 = vshrl.u32 %v1260, 16
        %v1322 = vpack.i.b16 %v1321, %v1320
        %v1325 = vpack.i.b16 %v1309, %v1284
        %v1326 = vshrl.u32 %v1284, 16
        %v1327 = vshrl.u32 %v1309, 16
        %v1328 = vpack.i.b16 %v1327, %v1326
        %v1331 = vpack.i.b16 %v1310, %v1285
        %v1332 = vshrl.u32 %v1285, 16
        %v1333 = vshrl.u32 %v1310, 16
        %v1334 = vpack.i.b16 %v1333, %v1332
        %vm1335 = vcmask 64512
        %v1337 = vsel %vm1335, %v753, 0
        %v1340 = vsel %vm1335, %v1033, 0
        %1342 = vmatprep.subr.bf16.mxu0 0
        %1343 = vmatpush1.bf16.xpose.msra.mxu0 0
        %1344 = vmatprep.subr.bf16.mxu0 0
        %1345 = vmatpush1.bf16.xpose.msra.mxu0 0
        %1346 = vmatprep.subr.bf16.mxu0 0
        %1347 = vmatpush1.bf16.xpose.msra.mxu0 0
        %1348 = vmatprep.subr.bf16.mxu0 0
        %1349 = vmatpush1.bf16.xpose.msra.mxu0 0
        %1350 = vmatprep.subr.bf16.mxu0 0
        %1351 = vmatpush1.bf16.xpose.msra.mxu0 0
        %1352 = vmatprep.subr.bf16.mxu0 0
        %1353 = vmatpush1.bf16.xpose.msra.mxu0 0
        %1354 = vmatprep.subr.bf16.mxu0 0
        %1355 = vmatpush1.bf16.xpose.msra.mxu0 0
        %1356 = vmatprep.subr.bf16.mxu0 0
        %1357 = vmatpush1.bf16.xpose.msra.mxu0 %v1340
        %1358 = vmatprep.subr.bf16.mxu0 0
        %1359 = vmatpush2.bf16.xpose.msra.mxu0 0
        %1360 = vmatprep.subr.bf16.mxu0 0
        %1361 = vmatpush2.bf16.xpose.msra.mxu0 0
        %1362 = vmatprep.subr.bf16.mxu0 0
        %1363 = vmatpush2.bf16.xpose.msra.mxu0 0
        %1364 = vmatprep.subr.bf16.mxu0 0
        %1365 = vmatpush2.bf16.xpose.msra.mxu0 0
        %1366 = vmatprep.subr.bf16.mxu0 0
        %1367 = vmatpush2.bf16.xpose.msra.mxu0 0
        %1368 = vmatprep.subr.bf16.mxu0 0
        %1369 = vmatpush2.bf16.xpose.msra.mxu0 0
        %1370 = vmatprep.subr.bf16.mxu0 0
        %1371 = vmatpush2.bf16.xpose.msra.mxu0 0
        %1372 = vmatprep.subr.bf16.mxu0 0
        %1373 = vmatpush2.bf16.xpose.msra.mxu0 0
        %1374 = vmatprep.mubr.bf16.mxu0 0
        %1375 = vmatmul.mubr.bf16.gmra.mxu0 %v1337
        %v1376 = vpop.f32.mrf.mxu0
        %v1377 = vadd.f32 0.0, %v1376
        %v1378 = vpop.f32.mrf.mxu0
        %v1379 = vpop.f32.mrf.mxu0
        %v1380 = vpop.f32.mrf.mxu0
        %1381 = vdwg.mxu0
        %v1383 = vsel %vm1335, %v756, 0
        %v1386 = vsel %vm1335, %v1036, 0
        %1388 = vmatprep.subr.bf16.mxu0 0
        %1389 = vmatpush1.bf16.xpose.msra.mxu0 0
        %1390 = vmatprep.subr.bf16.mxu0 0
        %1391 = vmatpush1.bf16.xpose.msra.mxu0 0
        %1392 = vmatprep.subr.bf16.mxu0 0
        %1393 = vmatpush1.bf16.xpose.msra.mxu0 0
        %1394 = vmatprep.subr.bf16.mxu0 0
        %1395 = vmatpush1.bf16.xpose.msra.mxu0 0
        %1396 = vmatprep.subr.bf16.mxu0 0
        %1397 = vmatpush1.bf16.xpose.msra.mxu0 0
        %1398 = vmatprep.subr.bf16.mxu0 0
        %1399 = vmatpush1.bf16.xpose.msra.mxu0 0
        %1400 = vmatprep.subr.bf16.mxu0 0
        %1401 = vmatpush1.bf16.xpose.msra.mxu0 0
        %1402 = vmatprep.subr.bf16.mxu0 0
        %1403 = vmatpush1.bf16.xpose.msra.mxu0 %v1386
        %1404 = vmatprep.subr.bf16.mxu0 0
        %1405 = vmatpush2.bf16.xpose.msra.mxu0 0
        %1406 = vmatprep.subr.bf16.mxu0 0
        %1407 = vmatpush2.bf16.xpose.msra.mxu0 0
        %1408 = vmatprep.subr.bf16.mxu0 0
        %1409 = vmatpush2.bf16.xpose.msra.mxu0 0
        %1410 = vmatprep.subr.bf16.mxu0 0
        %1411 = vmatpush2.bf16.xpose.msra.mxu0 0
        %1412 = vmatprep.subr.bf16.mxu0 0
        %1413 = vmatpush2.bf16.xpose.msra.mxu0 0
        %1414 = vmatprep.subr.bf16.mxu0 0
        %1415 = vmatpush2.bf16.xpose.msra.mxu0 0
        %1416 = vmatprep.subr.bf16.mxu0 0
        %1417 = vmatpush2.bf16.xpose.msra.mxu0 0
        %1418 = vmatprep.subr.bf16.mxu0 0
        %1419 = vmatpush2.bf16.xpose.msra.mxu0 0
        %1420 = vmatprep.mubr.bf16.mxu0 0
        %1421 = vmatmul.mubr.bf16.gmra.mxu0 %v1383
        %v1422 = vpop.f32.mrf.mxu0
        %v1423 = vadd.f32 0.0, %v1422
        %v1424 = vpop.f32.mrf.mxu0
        %v1425 = vpop.f32.mrf.mxu0
        %v1426 = vpop.f32.mrf.mxu0
        %1427 = vdwg.mxu0
        %v1429 = vsel %vm1335, %v759, 0
        %v1432 = vsel %vm1335, %v1039, 0
        %1434 = vmatprep.subr.bf16.mxu0 0
        %1435 = vmatpush1.bf16.xpose.msra.mxu0 0
        %1436 = vmatprep.subr.bf16.mxu0 0
        %1437 = vmatpush1.bf16.xpose.msra.mxu0 0
        %1438 = vmatprep.subr.bf16.mxu0 0
        %1439 = vmatpush1.bf16.xpose.msra.mxu0 0
        %1440 = vmatprep.subr.bf16.mxu0 0
        %1441 = vmatpush1.bf16.xpose.msra.mxu0 0
        %1442 = vmatprep.subr.bf16.mxu0 0
        %1443 = vmatpush1.bf16.xpose.msra.mxu0 0
        %1444 = vmatprep.subr.bf16.mxu0 0
        %1445 = vmatpush1.bf16.xpose.msra.mxu0 0
        %1446 = vmatprep.subr.bf16.mxu0 0
        %1447 = vmatpush1.bf16.xpose.msra.mxu0 0
        %1448 = vmatprep.subr.bf16.mxu0 0
        %1449 = vmatpush1.bf16.xpose.msra.mxu0 %v1432
        %1450 = vmatprep.subr.bf16.mxu0 0
        %1451 = vmatpush2.bf16.xpose.msra.mxu0 0
        %1452 = vmatprep.subr.bf16.mxu0 0
        %1453 = vmatpush2.bf16.xpose.msra.mxu0 0
        %1454 = vmatprep.subr.bf16.mxu0 0
        %1455 = vmatpush2.bf16.xpose.msra.mxu0 0
        %1456 = vmatprep.subr.bf16.mxu0 0
        %1457 = vmatpush2.bf16.xpose.msra.mxu0 0
        %1458 = vmatprep.subr.bf16.mxu0 0
        %1459 = vmatpush2.bf16.xpose.msra.mxu0 0
        %1460 = vmatprep.subr.bf16.mxu0 0
        %1461 = vmatpush2.bf16.xpose.msra.mxu0 0
        %1462 = vmatprep.subr.bf16.mxu0 0
        %1463 = vmatpush2.bf16.xpose.msra.mxu0 0
        %1464 = vmatprep.subr.bf16.mxu0 0
        %1465 = vmatpush2.bf16.xpose.msra.mxu0 0
        %1466 = vmatprep.mubr.bf16.mxu0 0
        %1467 = vmatmul.mubr.bf16.gmra.mxu0 %v1429
        %v1468 = vpop.f32.mrf.mxu0
        %v1469 = vadd.f32 0.0, %v1468
        %v1470 = vpop.f32.mrf.mxu0
        %v1471 = vpop.f32.mrf.mxu0
        %v1472 = vpop.f32.mrf.mxu0
        %1473 = vdwg.mxu0
        %v1475 = vsel %vm1335, %v762, 0
        %v1478 = vsel %vm1335, %v1042, 0
        %1480 = vmatprep.subr.bf16.mxu0 0
        %1481 = vmatpush1.bf16.xpose.msra.mxu0 0
        %1482 = vmatprep.subr.bf16.mxu0 0
        %1483 = vmatpush1.bf16.xpose.msra.mxu0 0
        %1484 = vmatprep.subr.bf16.mxu0 0
        %1485 = vmatpush1.bf16.xpose.msra.mxu0 0
        %1486 = vmatprep.subr.bf16.mxu0 0
        %1487 = vmatpush1.bf16.xpose.msra.mxu0 0
        %1488 = vmatprep.subr.bf16.mxu0 0
        %1489 = vmatpush1.bf16.xpose.msra.mxu0 0
        %1490 = vmatprep.subr.bf16.mxu0 0
        %1491 = vmatpush1.bf16.xpose.msra.mxu0 0
        %1492 = vmatprep.subr.bf16.mxu0 0
        %1493 = vmatpush1.bf16.xpose.msra.mxu0 0
        %1494 = vmatprep.subr.bf16.mxu0 0
        %1495 = vmatpush1.bf16.xpose.msra.mxu0 %v1478
        %1496 = vmatprep.subr.bf16.mxu0 0
        %1497 = vmatpush2.bf16.xpose.msra.mxu0 0
        %1498 = vmatprep.subr.bf16.mxu0 0
        %1499 = vmatpush2.bf16.xpose.msra.mxu0 0
        %1500 = vmatprep.subr.bf16.mxu0 0
        %1501 = vmatpush2.bf16.xpose.msra.mxu0 0
        %1502 = vmatprep.subr.bf16.mxu0 0
        %1503 = vmatpush2.bf16.xpose.msra.mxu0 0
        %1504 = vmatprep.subr.bf16.mxu0 0
        %1505 = vmatpush2.bf16.xpose.msra.mxu0 0
        %1506 = vmatprep.subr.bf16.mxu0 0
        %1507 = vmatpush2.bf16.xpose.msra.mxu0 0
        %1508 = vmatprep.subr.bf16.mxu0 0
        %1509 = vmatpush2.bf16.xpose.msra.mxu0 0
        %1510 = vmatprep.subr.bf16.mxu0 0
        %1511 = vmatpush2.bf16.xpose.msra.mxu0 0
        %1512 = vmatprep.mubr.bf16.mxu0 0
        %1513 = vmatmul.mubr.bf16.gmra.mxu0 %v1475
        %v1514 = vpop.f32.mrf.mxu0
        %v1515 = vadd.f32 0.0, %v1514
        %v1516 = vpop.f32.mrf.mxu0
        %v1517 = vpop.f32.mrf.mxu0
        %v1518 = vpop.f32.mrf.mxu0
        %1519 = vdwg.mxu0
        %v1521 = vsel %vm1335, %v765, 0
        %v1524 = vsel %vm1335, %v1045, 0
        %1526 = vmatprep.subr.bf16.mxu0 0
        %1527 = vmatpush1.bf16.xpose.msra.mxu0 0
        %1528 = vmatprep.subr.bf16.mxu0 0
        %1529 = vmatpush1.bf16.xpose.msra.mxu0 0
        %1530 = vmatprep.subr.bf16.mxu0 0
        %1531 = vmatpush1.bf16.xpose.msra.mxu0 0
        %1532 = vmatprep.subr.bf16.mxu0 0
        %1533 = vmatpush1.bf16.xpose.msra.mxu0 0
        %1534 = vmatprep.subr.bf16.mxu0 0
        %1535 = vmatpush1.bf16.xpose.msra.mxu0 0
        %1536 = vmatprep.subr.bf16.mxu0 0
        %1537 = vmatpush1.bf16.xpose.msra.mxu0 0
        %1538 = vmatprep.subr.bf16.mxu0 0
        %1539 = vmatpush1.bf16.xpose.msra.mxu0 0
        %1540 = vmatprep.subr.bf16.mxu0 0
        %1541 = vmatpush1.bf16.xpose.msra.mxu0 %v1524
        %1542 = vmatprep.subr.bf16.mxu0 0
        %1543 = vmatpush2.bf16.xpose.msra.mxu0 0
        %1544 = vmatprep.subr.bf16.mxu0 0
        %1545 = vmatpush2.bf16.xpose.msra.mxu0 0
        %1546 = vmatprep.subr.bf16.mxu0 0
        %1547 = vmatpush2.bf16.xpose.msra.mxu0 0
        %1548 = vmatprep.subr.bf16.mxu0 0
        %1549 = vmatpush2.bf16.xpose.msra.mxu0 0
        %1550 = vmatprep.subr.bf16.mxu0 0
        %1551 = vmatpush2.bf16.xpose.msra.mxu0 0
        %1552 = vmatprep.subr.bf16.mxu0 0
        %1553 = vmatpush2.bf16.xpose.msra.mxu0 0
        %1554 = vmatprep.subr.bf16.mxu0 0
        %1555 = vmatpush2.bf16.xpose.msra.mxu0 0
        %1556 = vmatprep.subr.bf16.mxu0 0
        %1557 = vmatpush2.bf16.xpose.msra.mxu0 0
        %1558 = vmatprep.mubr.bf16.mxu0 0
        %1559 = vmatmul.mubr.bf16.gmra.mxu0 %v1521
        %v1560 = vpop.f32.mrf.mxu0
        %v1561 = vadd.f32 0.0, %v1560
        %v1562 = vpop.f32.mrf.mxu0
        %v1563 = vpop.f32.mrf.mxu0
        %v1564 = vpop.f32.mrf.mxu0
        %1565 = vdwg.mxu0
        %v1567 = vsel %vm1335, %v768, 0
        %v1570 = vsel %vm1335, %v1048, 0
        %1572 = vmatprep.subr.bf16.mxu0 0
        %1573 = vmatpush1.bf16.xpose.msra.mxu0 0
        %1574 = vmatprep.subr.bf16.mxu0 0
        %1575 = vmatpush1.bf16.xpose.msra.mxu0 0
        %1576 = vmatprep.subr.bf16.mxu0 0
        %1577 = vmatpush1.bf16.xpose.msra.mxu0 0
        %1578 = vmatprep.subr.bf16.mxu0 0
        %1579 = vmatpush1.bf16.xpose.msra.mxu0 0
        %1580 = vmatprep.subr.bf16.mxu0 0
        %1581 = vmatpush1.bf16.xpose.msra.mxu0 0
        %1582 = vmatprep.subr.bf16.mxu0 0
        %1583 = vmatpush1.bf16.xpose.msra.mxu0 0
        %1584 = vmatprep.subr.bf16.mxu0 0
        %1585 = vmatpush1.bf16.xpose.msra.mxu0 0
        %1586 = vmatprep.subr.bf16.mxu0 0
        %1587 = vmatpush1.bf16.xpose.msra.mxu0 %v1570
        %1588 = vmatprep.subr.bf16.mxu0 0
        %1589 = vmatpush2.bf16.xpose.msra.mxu0 0
        %1590 = vmatprep.subr.bf16.mxu0 0
        %1591 = vmatpush2.bf16.xpose.msra.mxu0 0
        %1592 = vmatprep.subr.bf16.mxu0 0
        %1593 = vmatpush2.bf16.xpose.msra.mxu0 0
        %1594 = vmatprep.subr.bf16.mxu0 0
        %1595 = vmatpush2.bf16.xpose.msra.mxu0 0
        %1596 = vmatprep.subr.bf16.mxu0 0
        %1597 = vmatpush2.bf16.xpose.msra.mxu0 0
        %1598 = vmatprep.subr.bf16.mxu0 0
        %1599 = vmatpush2.bf16.xpose.msra.mxu0 0
        %1600 = vmatprep.subr.bf16.mxu0 0
        %1601 = vmatpush2.bf16.xpose.msra.mxu0 0
        %1602 = vmatprep.subr.bf16.mxu0 0
        %1603 = vmatpush2.bf16.xpose.msra.mxu0 0
        %1604 = vmatprep.mubr.bf16.mxu0 0
        %1605 = vmatmul.mubr.bf16.gmra.mxu0 %v1567
        %v1606 = vpop.f32.mrf.mxu0
        %v1607 = vadd.f32 0.0, %v1606
        %v1608 = vpop.f32.mrf.mxu0
        %v1609 = vpop.f32.mrf.mxu0
        %v1610 = vpop.f32.mrf.mxu0
        %1611 = vdwg.mxu0
        %v1613 = vsel %vm1335, %v771, 0
        %v1616 = vsel %vm1335, %v1051, 0
        %1618 = vmatprep.subr.bf16.mxu0 0
        %1619 = vmatpush1.bf16.xpose.msra.mxu0 0
        %1620 = vmatprep.subr.bf16.mxu0 0
        %1621 = vmatpush1.bf16.xpose.msra.mxu0 0
        %1622 = vmatprep.subr.bf16.mxu0 0
        %1623 = vmatpush1.bf16.xpose.msra.mxu0 0
        %1624 = vmatprep.subr.bf16.mxu0 0
        %1625 = vmatpush1.bf16.xpose.msra.mxu0 0
        %1626 = vmatprep.subr.bf16.mxu0 0
        %1627 = vmatpush1.bf16.xpose.msra.mxu0 0
        %1628 = vmatprep.subr.bf16.mxu0 0
        %1629 = vmatpush1.bf16.xpose.msra.mxu0 0
        %1630 = vmatprep.subr.bf16.mxu0 0
        %1631 = vmatpush1.bf16.xpose.msra.mxu0 0
        %1632 = vmatprep.subr.bf16.mxu0 0
        %1633 = vmatpush1.bf16.xpose.msra.mxu0 %v1616
        %1634 = vmatprep.subr.bf16.mxu0 0
        %1635 = vmatpush2.bf16.xpose.msra.mxu0 0
        %1636 = vmatprep.subr.bf16.mxu0 0
        %1637 = vmatpush2.bf16.xpose.msra.mxu0 0
        %1638 = vmatprep.subr.bf16.mxu0 0
        %1639 = vmatpush2.bf16.xpose.msra.mxu0 0
        %1640 = vmatprep.subr.bf16.mxu0 0
        %1641 = vmatpush2.bf16.xpose.msra.mxu0 0
        %1642 = vmatprep.subr.bf16.mxu0 0
        %1643 = vmatpush2.bf16.xpose.msra.mxu0 0
        %1644 = vmatprep.subr.bf16.mxu0 0
        %1645 = vmatpush2.bf16.xpose.msra.mxu0 0
        %1646 = vmatprep.subr.bf16.mxu0 0
        %1647 = vmatpush2.bf16.xpose.msra.mxu0 0
        %1648 = vmatprep.subr.bf16.mxu0 0
        %1649 = vmatpush2.bf16.xpose.msra.mxu0 0
        %1650 = vmatprep.mubr.bf16.mxu0 0
        %1651 = vmatmul.mubr.bf16.gmra.mxu0 %v1613
        %v1652 = vpop.f32.mrf.mxu0
        %v1653 = vadd.f32 0.0, %v1652
        %v1654 = vpop.f32.mrf.mxu0
        %v1655 = vpop.f32.mrf.mxu0
        %v1656 = vpop.f32.mrf.mxu0
        %1657 = vdwg.mxu0
        %v1659 = vsel %vm1335, %v774, 0
        %v1662 = vsel %vm1335, %v1054, 0
        %1664 = vmatprep.subr.bf16.mxu0 0
        %1665 = vmatpush1.bf16.xpose.msra.mxu0 0
        %1666 = vmatprep.subr.bf16.mxu0 0
        %1667 = vmatpush1.bf16.xpose.msra.mxu0 0
        %1668 = vmatprep.subr.bf16.mxu0 0
        %1669 = vmatpush1.bf16.xpose.msra.mxu0 0
        %1670 = vmatprep.subr.bf16.mxu0 0
        %1671 = vmatpush1.bf16.xpose.msra.mxu0 0
        %1672 = vmatprep.subr.bf16.mxu0 0
        %1673 = vmatpush1.bf16.xpose.msra.mxu0 0
        %1674 = vmatprep.subr.bf16.mxu0 0
        %1675 = vmatpush1.bf16.xpose.msra.mxu0 0
        %1676 = vmatprep.subr.bf16.mxu0 0
        %1677 = vmatpush1.bf16.xpose.msra.mxu0 0
        %1678 = vmatprep.subr.bf16.mxu0 0
        %1679 = vmatpush1.bf16.xpose.msra.mxu0 %v1662
        %1680 = vmatprep.subr.bf16.mxu0 0
        %1681 = vmatpush2.bf16.xpose.msra.mxu0 0
        %1682 = vmatprep.subr.bf16.mxu0 0
        %1683 = vmatpush2.bf16.xpose.msra.mxu0 0
        %1684 = vmatprep.subr.bf16.mxu0 0
        %1685 = vmatpush2.bf16.xpose.msra.mxu0 0
        %1686 = vmatprep.subr.bf16.mxu0 0
        %1687 = vmatpush2.bf16.xpose.msra.mxu0 0
        %1688 = vmatprep.subr.bf16.mxu0 0
        %1689 = vmatpush2.bf16.xpose.msra.mxu0 0
        %1690 = vmatprep.subr.bf16.mxu0 0
        %1691 = vmatpush2.bf16.xpose.msra.mxu0 0
        %1692 = vmatprep.subr.bf16.mxu0 0
        %1693 = vmatpush2.bf16.xpose.msra.mxu0 0
        %1694 = vmatprep.subr.bf16.mxu0 0
        %1695 = vmatpush2.bf16.xpose.msra.mxu0 0
        %1696 = vmatprep.mubr.bf16.mxu0 0
        %1697 = vmatmul.mubr.bf16.gmra.mxu0 %v1659
        %v1698 = vpop.f32.mrf.mxu0
        %v1699 = vadd.f32 0.0, %v1698
        %v1700 = vpop.f32.mrf.mxu0
        %v1701 = vpop.f32.mrf.mxu0
        %v1702 = vpop.f32.mrf.mxu0
        %1703 = vdwg.mxu0
        %v1704 = vld [vmem:[#allocation6] sm:$0x1]
        %v1705 = vld [vmem:[#allocation6 + $0x1] sm:$0x1]
        %v1706 = vsub.f32 %v1704, 1.0
        %v1707 = vsub.f32 %v1705, 1.0
        %v1708 = vmul.f32 %v1706, 1e+30
        %v1709 = vmul.f32 %v1707, 1e+30
        %v1712 = vlaneseq
        %v1713 = vshrl.u32 %v1712, 7
        %v1714 = vsub.s32 0, %v1713
        %v1715 = vrot.slane %v1708, %v1714
        %v1716 = vlaneseq
        %v1717 = vshrl.u32 %v1716, 7
        %v1718 = vsub.s32 0, %v1717
        %v1719 = vrot.slane %v1709, %v1718
        %v1722 = vadd.f32 %v1377, %v1715
        %v1723 = vadd.f32 %v1423, %v1715
        %v1724 = vadd.f32 %v1469, %v1715
        %v1725 = vadd.f32 %v1515, %v1715
        %v1726 = vadd.f32 %v1561, %v1719
        %v1727 = vadd.f32 %v1607, %v1719
        %v1728 = vadd.f32 %v1653, %v1719
        %v1729 = vadd.f32 %v1699, %v1719
        %v1730 = vsel %vm1335, %v1722, -inf
        %1731 = vmax.xlane.f32.xlu0 %v1730
        %v1732 = vpop.xlane.xlu0 %1731
        %v1733 = vsel %vm1335, %v1723, -inf
        %1734 = vmax.xlane.f32.xlu0 %v1733
        %v1735 = vpop.xlane.xlu0 %1734
        %v1736 = vsel %vm1335, %v1724, -inf
        %1737 = vmax.xlane.f32.xlu0 %v1736
        %v1738 = vpop.xlane.xlu0 %1737
        %v1739 = vsel %vm1335, %v1725, -inf
        %1740 = vmax.xlane.f32.xlu0 %v1739
        %v1741 = vpop.xlane.xlu0 %1740
        %v1742 = vsel %vm1335, %v1726, -inf
        %1743 = vmax.xlane.f32.xlu0 %v1742
        %v1744 = vpop.xlane.xlu0 %1743
        %v1745 = vsel %vm1335, %v1727, -inf
        %1746 = vmax.xlane.f32.xlu0 %v1745
        %v1747 = vpop.xlane.xlu0 %1746
        %v1748 = vsel %vm1335, %v1728, -inf
        %1749 = vmax.xlane.f32.xlu0 %v1748
        %v1750 = vpop.xlane.xlu0 %1749
        %v1751 = vsel %vm1335, %v1729, -inf
        %1752 = vmax.xlane.f32.xlu0 %v1751
        %v1753 = vpop.xlane.xlu0 %1752
        %v1754 = vsub.f32 %v1722, %v1732
        %v1755 = vsub.f32 %v1723, %v1735
        %v1756 = vsub.f32 %v1724, %v1738
        %v1757 = vsub.f32 %v1725, %v1741
        %v1758 = vsub.f32 %v1726, %v1744
        %v1759 = vsub.f32 %v1727, %v1747
        %v1760 = vsub.f32 %v1728, %v1750
        %v1761 = vsub.f32 %v1729, %v1753
        %v1762 = vmul.f32 %v1754, 1.442695
        %v1763 = vpow.pop %v1762
        %v1764 = vmul.f32 %v1755, 1.442695
        %v1765 = vpow.pop %v1764
        %v1766 = vmul.f32 %v1756, 1.442695
        %v1767 = vpow.pop %v1766
        %v1768 = vmul.f32 %v1757, 1.442695
        %v1769 = vpow.pop %v1768
        %v1770 = vmul.f32 %v1758, 1.442695
        %v1771 = vpow.pop %v1770
        %v1772 = vmul.f32 %v1759, 1.442695
        %v1773 = vpow.pop %v1772
        %v1774 = vmul.f32 %v1760, 1.442695
        %v1775 = vpow.pop %v1774
        %v1776 = vmul.f32 %v1761, 1.442695
        %v1777 = vpow.pop %v1776
        %v1778 = vsel %vm1335, %v1763, 0.0
        %1779 = vadd.xlane.f32.xlu0 %v1778
        %v1780 = vpop.xlane.xlu0 %1779
        %v1781 = vsel %vm1335, %v1765, 0.0
        %1782 = vadd.xlane.f32.xlu0 %v1781
        %v1783 = vpop.xlane.xlu0 %1782
        %v1784 = vsel %vm1335, %v1767, 0.0
        %1785 = vadd.xlane.f32.xlu0 %v1784
        %v1786 = vpop.xlane.xlu0 %1785
        %v1787 = vsel %vm1335, %v1769, 0.0
        %1788 = vadd.xlane.f32.xlu0 %v1787
        %v1789 = vpop.xlane.xlu0 %1788
        %v1790 = vsel %vm1335, %v1771, 0.0
        %1791 = vadd.xlane.f32.xlu0 %v1790
        %v1792 = vpop.xlane.xlu0 %1791
        %v1793 = vsel %vm1335, %v1773, 0.0
        %1794 = vadd.xlane.f32.xlu0 %v1793
        %v1795 = vpop.xlane.xlu0 %1794
        %v1796 = vsel %vm1335, %v1775, 0.0
        %1797 = vadd.xlane.f32.xlu0 %v1796
        %v1798 = vpop.xlane.xlu0 %1797
        %v1799 = vsel %vm1335, %v1777, 0.0
        %1800 = vadd.xlane.f32.xlu0 %v1799
        %v1801 = vpop.xlane.xlu0 %1800
        %v1802 = vrcp.pop %v1780
        %v1803 = vrcp.pop %v1783
        %v1804 = vrcp.pop %v1786
        %v1805 = vrcp.pop %v1789
        %v1806 = vrcp.pop %v1792
        %v1807 = vrcp.pop %v1795
        %v1808 = vrcp.pop %v1798
        %v1809 = vrcp.pop %v1801
        %v1810 = vmul.f32 %v1763, %v1802
        %v1811 = vmul.f32 %v1765, %v1803
        %v1812 = vmul.f32 %v1767, %v1804
        %v1813 = vmul.f32 %v1769, %v1805
        %v1814 = vmul.f32 %v1771, %v1806
        %v1815 = vmul.f32 %v1773, %v1807
        %v1816 = vmul.f32 %v1775, %v1808
        %v1817 = vmul.f32 %v1777, %v1809
        %v1818 = vpack.c.bf16 %v1810, %v1810
        %v1819 = vpack.c.bf16 %v1811, %v1811
        %v1820 = vpack.c.bf16 %v1812, %v1812
        %v1821 = vpack.c.bf16 %v1813, %v1813
        %v1822 = vpack.c.bf16 %v1814, %v1814
        %v1823 = vpack.c.bf16 %v1815, %v1815
        %v1824 = vpack.c.bf16 %v1816, %v1816
        %v1825 = vpack.c.bf16 %v1817, %v1817
        %v1827 = vsel %vm1335, %v1818, 0
        %vm1829 = vcmask 1043456
        %v1831 = vsel %vm1829, %v1313, 0
        %1833 = vmatprep.subr.bf16.mxu0 0
        %1834 = vmatpush1.bf16.msra.mxu0 0
        %1835 = vmatprep.subr.bf16.mxu0 0
        %1836 = vmatpush1.bf16.msra.mxu0 0
        %1837 = vmatprep.subr.bf16.mxu0 0
        %1838 = vmatpush1.bf16.msra.mxu0 0
        %1839 = vmatprep.subr.bf16.mxu0 0
        %1840 = vmatpush1.bf16.msra.mxu0 0
        %1841 = vmatprep.subr.bf16.mxu0 0
        %1842 = vmatpush1.bf16.msra.mxu0 0
        %1843 = vmatprep.subr.bf16.mxu0 0
        %1844 = vmatpush1.bf16.msra.mxu0 0
        %1845 = vmatprep.subr.bf16.mxu0 0
        %1846 = vmatpush1.bf16.msra.mxu0 0
        %1847 = vmatprep.subr.bf16.mxu0 0
        %1848 = vmatpush1.bf16.msra.mxu0 %v1831
        %1849 = vmatprep.subr.bf16.mxu0 0
        %1850 = vmatpush2.bf16.msra.mxu0 0
        %1851 = vmatprep.subr.bf16.mxu0 0
        %1852 = vmatpush2.bf16.msra.mxu0 0
        %1853 = vmatprep.subr.bf16.mxu0 0
        %1854 = vmatpush2.bf16.msra.mxu0 0
        %1855 = vmatprep.subr.bf16.mxu0 0
        %1856 = vmatpush2.bf16.msra.mxu0 0
        %1857 = vmatprep.subr.bf16.mxu0 0
        %1858 = vmatpush2.bf16.msra.mxu0 0
        %1859 = vmatprep.subr.bf16.mxu0 0
        %1860 = vmatpush2.bf16.msra.mxu0 0
        %1861 = vmatprep.subr.bf16.mxu0 0
        %1862 = vmatpush2.bf16.msra.mxu0 0
        %1863 = vmatprep.subr.bf16.mxu0 0
        %1864 = vmatpush2.bf16.msra.mxu0 0
        %1865 = vmatprep.mubr.bf16.mxu0 0
        %1866 = vmatmul.mubr.bf16.gmra.mxu0 %v1827
        %v1867 = vpop.f32.mrf.mxu0
        %v1868 = vadd.f32 0.0, %v1867
        %v1869 = vpop.f32.mrf.mxu0
        %v1870 = vpop.f32.mrf.mxu0
        %v1871 = vpop.f32.mrf.mxu0
        %1872 = vdwg.mxu0
        %v1874 = vsel %vm1335, %v1819, 0
        %v1877 = vsel %vm1829, %v1316, 0
        %1879 = vmatprep.subr.bf16.mxu0 0
        %1880 = vmatpush1.bf16.msra.mxu0 0
        %1881 = vmatprep.subr.bf16.mxu0 0
        %1882 = vmatpush1.bf16.msra.mxu0 0
        %1883 = vmatprep.subr.bf16.mxu0 0
        %1884 = vmatpush1.bf16.msra.mxu0 0
        %1885 = vmatprep.subr.bf16.mxu0 0
        %1886 = vmatpush1.bf16.msra.mxu0 0
        %1887 = vmatprep.subr.bf16.mxu0 0
        %1888 = vmatpush1.bf16.msra.mxu0 0
        %1889 = vmatprep.subr.bf16.mxu0 0
        %1890 = vmatpush1.bf16.msra.mxu0 0
        %1891 = vmatprep.subr.bf16.mxu0 0
        %1892 = vmatpush1.bf16.msra.mxu0 0
        %1893 = vmatprep.subr.bf16.mxu0 0
        %1894 = vmatpush1.bf16.msra.mxu0 %v1877
        %1895 = vmatprep.subr.bf16.mxu0 0
        %1896 = vmatpush2.bf16.msra.mxu0 0
        %1897 = vmatprep.subr.bf16.mxu0 0
        %1898 = vmatpush2.bf16.msra.mxu0 0
        %1899 = vmatprep.subr.bf16.mxu0 0
        %1900 = vmatpush2.bf16.msra.mxu0 0
        %1901 = vmatprep.subr.bf16.mxu0 0
        %1902 = vmatpush2.bf16.msra.mxu0 0
        %1903 = vmatprep.subr.bf16.mxu0 0
        %1904 = vmatpush2.bf16.msra.mxu0 0
        %1905 = vmatprep.subr.bf16.mxu0 0
        %1906 = vmatpush2.bf16.msra.mxu0 0
        %1907 = vmatprep.subr.bf16.mxu0 0
        %1908 = vmatpush2.bf16.msra.mxu0 0
        %1909 = vmatprep.subr.bf16.mxu0 0
        %1910 = vmatpush2.bf16.msra.mxu0 0
        %1911 = vmatprep.mubr.bf16.mxu0 0
        %1912 = vmatmul.mubr.bf16.gmra.mxu0 %v1874
        %v1913 = vpop.f32.mrf.mxu0
        %v1914 = vadd.f32 0.0, %v1913
        %v1915 = vpop.f32.mrf.mxu0
        %v1916 = vpop.f32.mrf.mxu0
        %v1917 = vpop.f32.mrf.mxu0
        %1918 = vdwg.mxu0
        %v1920 = vsel %vm1335, %v1820, 0
        %v1923 = vsel %vm1829, %v1319, 0
        %1925 = vmatprep.subr.bf16.mxu0 0
        %1926 = vmatpush1.bf16.msra.mxu0 0
        %1927 = vmatprep.subr.bf16.mxu0 0
        %1928 = vmatpush1.bf16.msra.mxu0 0
        %1929 = vmatprep.subr.bf16.mxu0 0
        %1930 = vmatpush1.bf16.msra.mxu0 0
        %1931 = vmatprep.subr.bf16.mxu0 0
        %1932 = vmatpush1.bf16.msra.mxu0 0
        %1933 = vmatprep.subr.bf16.mxu0 0
        %1934 = vmatpush1.bf16.msra.mxu0 0
        %1935 = vmatprep.subr.bf16.mxu0 0
        %1936 = vmatpush1.bf16.msra.mxu0 0
        %1937 = vmatprep.subr.bf16.mxu0 0
        %1938 = vmatpush1.bf16.msra.mxu0 0
        %1939 = vmatprep.subr.bf16.mxu0 0
        %1940 = vmatpush1.bf16.msra.mxu0 %v1923
        %1941 = vmatprep.subr.bf16.mxu0 0
        %1942 = vmatpush2.bf16.msra.mxu0 0
        %1943 = vmatprep.subr.bf16.mxu0 0
        %1944 = vmatpush2.bf16.msra.mxu0 0
        %1945 = vmatprep.subr.bf16.mxu0 0
        %1946 = vmatpush2.bf16.msra.mxu0 0
        %1947 = vmatprep.subr.bf16.mxu0 0
        %1948 = vmatpush2.bf16.msra.mxu0 0
        %1949 = vmatprep.subr.bf16.mxu0 0
        %1950 = vmatpush2.bf16.msra.mxu0 0
        %1951 = vmatprep.subr.bf16.mxu0 0
        %1952 = vmatpush2.bf16.msra.mxu0 0
        %1953 = vmatprep.subr.bf16.mxu0 0
        %1954 = vmatpush2.bf16.msra.mxu0 0
        %1955 = vmatprep.subr.bf16.mxu0 0
        %1956 = vmatpush2.bf16.msra.mxu0 0
        %1957 = vmatprep.mubr.bf16.mxu0 0
        %1958 = vmatmul.mubr.bf16.gmra.mxu0 %v1920
        %v1959 = vpop.f32.mrf.mxu0
        %v1960 = vadd.f32 0.0, %v1959
        %v1961 = vpop.f32.mrf.mxu0
        %v1962 = vpop.f32.mrf.mxu0
        %v1963 = vpop.f32.mrf.mxu0
        %1964 = vdwg.mxu0
        %v1966 = vsel %vm1335, %v1821, 0
        %v1969 = vsel %vm1829, %v1322, 0
        %1971 = vmatprep.subr.bf16.mxu0 0
        %1972 = vmatpush1.bf16.msra.mxu0 0
        %1973 = vmatprep.subr.bf16.mxu0 0
        %1974 = vmatpush1.bf16.msra.mxu0 0
        %1975 = vmatprep.subr.bf16.mxu0 0
        %1976 = vmatpush1.bf16.msra.mxu0 0
        %1977 = vmatprep.subr.bf16.mxu0 0
        %1978 = vmatpush1.bf16.msra.mxu0 0
        %1979 = vmatprep.subr.bf16.mxu0 0
        %1980 = vmatpush1.bf16.msra.mxu0 0
        %1981 = vmatprep.subr.bf16.mxu0 0
        %1982 = vmatpush1.bf16.msra.mxu0 0
        %1983 = vmatprep.subr.bf16.mxu0 0
        %1984 = vmatpush1.bf16.msra.mxu0 0
        %1985 = vmatprep.subr.bf16.mxu0 0
        %1986 = vmatpush1.bf16.msra.mxu0 %v1969
        %1987 = vmatprep.subr.bf16.mxu0 0
        %1988 = vmatpush2.bf16.msra.mxu0 0
        %1989 = vmatprep.subr.bf16.mxu0 0
        %1990 = vmatpush2.bf16.msra.mxu0 0
        %1991 = vmatprep.subr.bf16.mxu0 0
        %1992 = vmatpush2.bf16.msra.mxu0 0
        %1993 = vmatprep.subr.bf16.mxu0 0
        %1994 = vmatpush2.bf16.msra.mxu0 0
        %1995 = vmatprep.subr.bf16.mxu0 0
        %1996 = vmatpush2.bf16.msra.mxu0 0
        %1997 = vmatprep.subr.bf16.mxu0 0
        %1998 = vmatpush2.bf16.msra.mxu0 0
        %1999 = vmatprep.subr.bf16.mxu0 0
        %2000 = vmatpush2.bf16.msra.mxu0 0
        %2001 = vmatprep.subr.bf16.mxu0 0
        %2002 = vmatpush2.bf16.msra.mxu0 0
        %2003 = vmatprep.mubr.bf16.mxu0 0
        %2004 = vmatmul.mubr.bf16.gmra.mxu0 %v1966
        %v2005 = vpop.f32.mrf.mxu0
        %v2006 = vadd.f32 0.0, %v2005
        %v2007 = vpop.f32.mrf.mxu0
        %v2008 = vpop.f32.mrf.mxu0
        %v2009 = vpop.f32.mrf.mxu0
        %2010 = vdwg.mxu0
        %v2012 = vsel %vm1335, %v1822, 0
        %v2015 = vsel %vm1829, %v1325, 0
        %2017 = vmatprep.subr.bf16.mxu0 0
        %2018 = vmatpush1.bf16.msra.mxu0 0
        %2019 = vmatprep.subr.bf16.mxu0 0
        %2020 = vmatpush1.bf16.msra.mxu0 0
        %2021 = vmatprep.subr.bf16.mxu0 0
        %2022 = vmatpush1.bf16.msra.mxu0 0
        %2023 = vmatprep.subr.bf16.mxu0 0
        %2024 = vmatpush1.bf16.msra.mxu0 0
        %2025 = vmatprep.subr.bf16.mxu0 0
        %2026 = vmatpush1.bf16.msra.mxu0 0
        %2027 = vmatprep.subr.bf16.mxu0 0
        %2028 = vmatpush1.bf16.msra.mxu0 0
        %2029 = vmatprep.subr.bf16.mxu0 0
        %2030 = vmatpush1.bf16.msra.mxu0 0
        %2031 = vmatprep.subr.bf16.mxu0 0
        %2032 = vmatpush1.bf16.msra.mxu0 %v2015
        %2033 = vmatprep.subr.bf16.mxu0 0
        %2034 = vmatpush2.bf16.msra.mxu0 0
        %2035 = vmatprep.subr.bf16.mxu0 0
        %2036 = vmatpush2.bf16.msra.mxu0 0
        %2037 = vmatprep.subr.bf16.mxu0 0
        %2038 = vmatpush2.bf16.msra.mxu0 0
        %2039 = vmatprep.subr.bf16.mxu0 0
        %2040 = vmatpush2.bf16.msra.mxu0 0
        %2041 = vmatprep.subr.bf16.mxu0 0
        %2042 = vmatpush2.bf16.msra.mxu0 0
        %2043 = vmatprep.subr.bf16.mxu0 0
        %2044 = vmatpush2.bf16.msra.mxu0 0
        %2045 = vmatprep.subr.bf16.mxu0 0
        %2046 = vmatpush2.bf16.msra.mxu0 0
        %2047 = vmatprep.subr.bf16.mxu0 0
        %2048 = vmatpush2.bf16.msra.mxu0 0
        %2049 = vmatprep.mubr.bf16.mxu0 0
        %2050 = vmatmul.mubr.bf16.gmra.mxu0 %v2012
        %v2051 = vpop.f32.mrf.mxu0
        %v2052 = vadd.f32 0.0, %v2051
        %v2053 = vpop.f32.mrf.mxu0
        %v2054 = vpop.f32.mrf.mxu0
        %v2055 = vpop.f32.mrf.mxu0
        %2056 = vdwg.mxu0
        %v2058 = vsel %vm1335, %v1823, 0
        %v2061 = vsel %vm1829, %v1328, 0
        %2063 = vmatprep.subr.bf16.mxu0 0
        %2064 = vmatpush1.bf16.msra.mxu0 0
        %2065 = vmatprep.subr.bf16.mxu0 0
        %2066 = vmatpush1.bf16.msra.mxu0 0
        %2067 = vmatprep.subr.bf16.mxu0 0
        %2068 = vmatpush1.bf16.msra.mxu0 0
        %2069 = vmatprep.subr.bf16.mxu0 0
        %2070 = vmatpush1.bf16.msra.mxu0 0
        %2071 = vmatprep.subr.bf16.mxu0 0
        %2072 = vmatpush1.bf16.msra.mxu0 0
        %2073 = vmatprep.subr.bf16.mxu0 0
        %2074 = vmatpush1.bf16.msra.mxu0 0
        %2075 = vmatprep.subr.bf16.mxu0 0
        %2076 = vmatpush1.bf16.msra.mxu0 0
        %2077 = vmatprep.subr.bf16.mxu0 0
        %2078 = vmatpush1.bf16.msra.mxu0 %v2061
        %2079 = vmatprep.subr.bf16.mxu0 0
        %2080 = vmatpush2.bf16.msra.mxu0 0
        %2081 = vmatprep.subr.bf16.mxu0 0
        %2082 = vmatpush2.bf16.msra.mxu0 0
        %2083 = vmatprep.subr.bf16.mxu0 0
        %2084 = vmatpush2.bf16.msra.mxu0 0
        %2085 = vmatprep.subr.bf16.mxu0 0
        %2086 = vmatpush2.bf16.msra.mxu0 0
        %2087 = vmatprep.subr.bf16.mxu0 0
        %2088 = vmatpush2.bf16.msra.mxu0 0
        %2089 = vmatprep.subr.bf16.mxu0 0
        %2090 = vmatpush2.bf16.msra.mxu0 0
        %2091 = vmatprep.subr.bf16.mxu0 0
        %2092 = vmatpush2.bf16.msra.mxu0 0
        %2093 = vmatprep.subr.bf16.mxu0 0
        %2094 = vmatpush2.bf16.msra.mxu0 0
        %2095 = vmatprep.mubr.bf16.mxu0 0
        %2096 = vmatmul.mubr.bf16.gmra.mxu0 %v2058
        %v2097 = vpop.f32.mrf.mxu0
        %v2098 = vadd.f32 0.0, %v2097
        %v2099 = vpop.f32.mrf.mxu0
        %v2100 = vpop.f32.mrf.mxu0
        %v2101 = vpop.f32.mrf.mxu0
        %2102 = vdwg.mxu0
        %v2104 = vsel %vm1335, %v1824, 0
        %v2107 = vsel %vm1829, %v1331, 0
        %2109 = vmatprep.subr.bf16.mxu0 0
        %2110 = vmatpush1.bf16.msra.mxu0 0
        %2111 = vmatprep.subr.bf16.mxu0 0
        %2112 = vmatpush1.bf16.msra.mxu0 0
        %2113 = vmatprep.subr.bf16.mxu0 0
        %2114 = vmatpush1.bf16.msra.mxu0 0
        %2115 = vmatprep.subr.bf16.mxu0 0
        %2116 = vmatpush1.bf16.msra.mxu0 0
        %2117 = vmatprep.subr.bf16.mxu0 0
        %2118 = vmatpush1.bf16.msra.mxu0 0
        %2119 = vmatprep.subr.bf16.mxu0 0
        %2120 = vmatpush1.bf16.msra.mxu0 0
        %2121 = vmatprep.subr.bf16.mxu0 0
        %2122 = vmatpush1.bf16.msra.mxu0 0
        %2123 = vmatprep.subr.bf16.mxu0 0
        %2124 = vmatpush1.bf16.msra.mxu0 %v2107
        %2125 = vmatprep.subr.bf16.mxu0 0
        %2126 = vmatpush2.bf16.msra.mxu0 0
        %2127 = vmatprep.subr.bf16.mxu0 0
        %2128 = vmatpush2.bf16.msra.mxu0 0
        %2129 = vmatprep.subr.bf16.mxu0 0
        %2130 = vmatpush2.bf16.msra.mxu0 0
        %2131 = vmatprep.subr.bf16.mxu0 0
        %2132 = vmatpush2.bf16.msra.mxu0 0
        %2133 = vmatprep.subr.bf16.mxu0 0
        %2134 = vmatpush2.bf16.msra.mxu0 0
        %2135 = vmatprep.subr.bf16.mxu0 0
        %2136 = vmatpush2.bf16.msra.mxu0 0
        %2137 = vmatprep.subr.bf16.mxu0 0
        %2138 = vmatpush2.bf16.msra.mxu0 0
        %2139 = vmatprep.subr.bf16.mxu0 0
        %2140 = vmatpush2.bf16.msra.mxu0 0
        %2141 = vmatprep.mubr.bf16.mxu0 0
        %2142 = vmatmul.mubr.bf16.gmra.mxu0 %v2104
        %v2143 = vpop.f32.mrf.mxu0
        %v2144 = vadd.f32 0.0, %v2143
        %v2145 = vpop.f32.mrf.mxu0
        %v2146 = vpop.f32.mrf.mxu0
        %v2147 = vpop.f32.mrf.mxu0
        %2148 = vdwg.mxu0
        %v2150 = vsel %vm1335, %v1825, 0
        %v2153 = vsel %vm1829, %v1334, 0
        %2155 = vmatprep.subr.bf16.mxu0 0
        %2156 = vmatpush1.bf16.msra.mxu0 0
        %2157 = vmatprep.subr.bf16.mxu0 0
        %2158 = vmatpush1.bf16.msra.mxu0 0
        %2159 = vmatprep.subr.bf16.mxu0 0
        %2160 = vmatpush1.bf16.msra.mxu0 0
        %2161 = vmatprep.subr.bf16.mxu0 0
        %2162 = vmatpush1.bf16.msra.mxu0 0
        %2163 = vmatprep.subr.bf16.mxu0 0
        %2164 = vmatpush1.bf16.msra.mxu0 0
        %2165 = vmatprep.subr.bf16.mxu0 0
        %2166 = vmatpush1.bf16.msra.mxu0 0
        %2167 = vmatprep.subr.bf16.mxu0 0
        %2168 = vmatpush1.bf16.msra.mxu0 0
        %2169 = vmatprep.subr.bf16.mxu0 0
        %2170 = vmatpush1.bf16.msra.mxu0 %v2153
        %2171 = vmatprep.subr.bf16.mxu0 0
        %2172 = vmatpush2.bf16.msra.mxu0 0
        %2173 = vmatprep.subr.bf16.mxu0 0
        %2174 = vmatpush2.bf16.msra.mxu0 0
        %2175 = vmatprep.subr.bf16.mxu0 0
        %2176 = vmatpush2.bf16.msra.mxu0 0
        %2177 = vmatprep.subr.bf16.mxu0 0
        %2178 = vmatpush2.bf16.msra.mxu0 0
        %2179 = vmatprep.subr.bf16.mxu0 0
        %2180 = vmatpush2.bf16.msra.mxu0 0
        %2181 = vmatprep.subr.bf16.mxu0 0
        %2182 = vmatpush2.bf16.msra.mxu0 0
        %2183 = vmatprep.subr.bf16.mxu0 0
        %2184 = vmatpush2.bf16.msra.mxu0 0
        %2185 = vmatprep.subr.bf16.mxu0 0
        %2186 = vmatpush2.bf16.msra.mxu0 0
        %2187 = vmatprep.mubr.bf16.mxu0 0
        %2188 = vmatmul.mubr.bf16.gmra.mxu0 %v2150
        %v2189 = vpop.f32.mrf.mxu0
        %v2190 = vadd.f32 0.0, %v2189
        %v2191 = vpop.f32.mrf.mxu0
        %v2192 = vpop.f32.mrf.mxu0
        %v2193 = vpop.f32.mrf.mxu0
        %2194 = vdwg.mxu0
        %v2195 = vpack.c.bf16 %v1868, %v1868
        %v2197 = vunpack.c.l.s4 1983009808
        %v2198 = vunpack.c.0.s8 %v2197
        %v2199 = vlaneseq
        %v2200 = vshrl.u32 %v2199, 7
        %v2201 = vsub.s32 %v2198, %v2200
        %v2202 = vrot.slane %v2195, %v2201
        %v2203 = vpack.c.bf16 %v1960, %v1960
        %v2205 = vunpack.c.l.s4 1983009808
        %v2206 = vunpack.c.0.s8 %v2205
        %v2207 = vlaneseq
        %v2208 = vshrl.u32 %v2207, 7
        %v2209 = vsub.s32 %v2206, %v2208
        %v2210 = vrot.slane %v2203, %v2209
        %v2211 = vcombine.low %v2202, %v2210
        %v2212 = vcombine.high %v2202, %v2210
        %v2214 = vunpack.c.l.s4 1934713408
        %v2215 = vunpack.c.0.s8 %v2214
        %v2216 = vlaneseq
        %v2217 = vshrl.u32 %v2216, 7
        %v2218 = vsub.s32 %v2215, %v2217
        %v2219 = vrot.slane %v2211, %v2218
        %v2221 = vunpack.c.l.s4 1934713408
        %v2222 = vunpack.c.0.s8 %v2221
        %v2223 = vlaneseq
        %v2224 = vshrl.u32 %v2223, 7
        %v2225 = vsub.s32 %v2222, %v2224
        %v2226 = vrot.slane %v2212, %v2225
        %v2227 = vcombine.high %v2219, 0
        %v2228 = vcombine.high %v2226, 0
        %v2229 = vpack.c.bf16 %v1914, %v1914
        %v2231 = vunpack.c.l.s4 1983009808
        %v2232 = vunpack.c.0.s8 %v2231
        %v2233 = vlaneseq
        %v2234 = vshrl.u32 %v2233, 7
        %v2235 = vsub.s32 %v2232, %v2234
        %v2236 = vrot.slane %v2229, %v2235
        %v2237 = vpack.c.bf16 %v2006, %v2006
        %v2239 = vunpack.c.l.s4 1983009808
        %v2240 = vunpack.c.0.s8 %v2239
        %v2241 = vlaneseq
        %v2242 = vshrl.u32 %v2241, 7
        %v2243 = vsub.s32 %v2240, %v2242
        %v2244 = vrot.slane %v2237, %v2243
        %v2245 = vcombine.low %v2236, %v2244
        %v2246 = vcombine.high %v2236, %v2244
        %v2248 = vunpack.c.l.s4 1934713408
        %v2249 = vunpack.c.0.s8 %v2248
        %v2250 = vlaneseq
        %v2251 = vshrl.u32 %v2250, 7
        %v2252 = vsub.s32 %v2249, %v2251
        %v2253 = vrot.slane %v2245, %v2252
        %v2255 = vunpack.c.l.s4 1934713408
        %v2256 = vunpack.c.0.s8 %v2255
        %v2257 = vlaneseq
        %v2258 = vshrl.u32 %v2257, 7
        %v2259 = vsub.s32 %v2256, %v2258
        %v2260 = vrot.slane %v2246, %v2259
        %v2261 = vcombine.high %v2253, 0
        %v2262 = vcombine.high %v2260, 0
        %v2263 = vpack.c.bf16 %v2052, %v2052
        %v2265 = vunpack.c.l.s4 1983009808
        %v2266 = vunpack.c.0.s8 %v2265
        %v2267 = vlaneseq
        %v2268 = vshrl.u32 %v2267, 7
        %v2269 = vsub.s32 %v2266, %v2268
        %v2270 = vrot.slane %v2263, %v2269
        %v2271 = vpack.c.bf16 %v2144, %v2144
        %v2273 = vunpack.c.l.s4 1983009808
        %v2274 = vunpack.c.0.s8 %v2273
        %v2275 = vlaneseq
        %v2276 = vshrl.u32 %v2275, 7
        %v2277 = vsub.s32 %v2274, %v2276
        %v2278 = vrot.slane %v2271, %v2277
        %v2279 = vcombine.low %v2270, %v2278
        %v2280 = vcombine.high %v2270, %v2278
        %v2282 = vunpack.c.l.s4 1934713408
        %v2283 = vunpack.c.0.s8 %v2282
        %v2284 = vlaneseq
        %v2285 = vshrl.u32 %v2284, 7
        %v2286 = vsub.s32 %v2283, %v2285
        %v2287 = vrot.slane %v2279, %v2286
        %v2289 = vunpack.c.l.s4 1934713408
        %v2290 = vunpack.c.0.s8 %v2289
        %v2291 = vlaneseq
        %v2292 = vshrl.u32 %v2291, 7
        %v2293 = vsub.s32 %v2290, %v2292
        %v2294 = vrot.slane %v2280, %v2293
        %v2295 = vcombine.high %v2287, 0
        %v2296 = vcombine.high %v2294, 0
        %v2297 = vpack.c.bf16 %v2098, %v2098
        %v2299 = vunpack.c.l.s4 1983009808
        %v2300 = vunpack.c.0.s8 %v2299
        %v2301 = vlaneseq
        %v2302 = vshrl.u32 %v2301, 7
        %v2303 = vsub.s32 %v2300, %v2302
        %v2304 = vrot.slane %v2297, %v2303
        %v2305 = vpack.c.bf16 %v2190, %v2190
        %v2307 = vunpack.c.l.s4 1983009808
        %v2308 = vunpack.c.0.s8 %v2307
        %v2309 = vlaneseq
        %v2310 = vshrl.u32 %v2309, 7
        %v2311 = vsub.s32 %v2308, %v2310
        %v2312 = vrot.slane %v2305, %v2311
        %v2313 = vcombine.low %v2304, %v2312
        %v2314 = vcombine.high %v2304, %v2312
        %v2316 = vunpack.c.l.s4 1934713408
        %v2317 = vunpack.c.0.s8 %v2316
        %v2318 = vlaneseq
        %v2319 = vshrl.u32 %v2318, 7
        %v2320 = vsub.s32 %v2317, %v2319
        %v2321 = vrot.slane %v2313, %v2320
        %v2323 = vunpack.c.l.s4 1934713408
        %v2324 = vunpack.c.0.s8 %v2323
        %v2325 = vlaneseq
        %v2326 = vshrl.u32 %v2325, 7
        %v2327 = vsub.s32 %v2324, %v2326
        %v2328 = vrot.slane %v2314, %v2327
        %v2329 = vcombine.high %v2321, 0
        %v2330 = vcombine.high %v2328, 0
        %v2333 = vpack.i.b16 %v2253, %v2219
        %v2335 = vshrl.u32 %v2219, 16
        %v2336 = vshrl.u32 %v2253, 16
        %v2337 = vpack.i.b16 %v2336, %v2335
        %v2341 = vpack.i.b16 %v2261, %v2227
        %v2343 = vshrl.u32 %v2227, 16
        %v2344 = vshrl.u32 %v2261, 16
        %v2345 = vpack.i.b16 %v2344, %v2343
        %v2349 = vpack.i.b16 %v2260, %v2226
        %v2351 = vshrl.u32 %v2226, 16
        %v2352 = vshrl.u32 %v2260, 16
        %v2353 = vpack.i.b16 %v2352, %v2351
        %v2357 = vpack.i.b16 %v2262, %v2228
        %v2359 = vshrl.u32 %v2228, 16
        %v2360 = vshrl.u32 %v2262, 16
        %v2361 = vpack.i.b16 %v2360, %v2359
        %v2365 = vpack.i.b16 %v2321, %v2287
        %v2367 = vshrl.u32 %v2287, 16
        %v2368 = vshrl.u32 %v2321, 16
        %v2369 = vpack.i.b16 %v2368, %v2367
        %v2373 = vpack.i.b16 %v2329, %v2295
        %v2375 = vshrl.u32 %v2295, 16
        %v2376 = vshrl.u32 %v2329, 16
        %v2377 = vpack.i.b16 %v2376, %v2375
        %v2381 = vpack.i.b16 %v2328, %v2294
        %v2383 = vshrl.u32 %v2294, 16
        %v2384 = vshrl.u32 %v2328, 16
        %v2385 = vpack.i.b16 %v2384, %v2383
        %v2389 = vpack.i.b16 %v2330, %v2296
        %v2391 = vshrl.u32 %v2296, 16
        %v2392 = vshrl.u32 %v2330, 16
        %v2393 = vpack.i.b16 %v2392, %v2391
        %v2395 = vcombine.low %v2333, %v2349
        %v2397 = vunpack.c.l.s4 1983009808
        %v2398 = vunpack.c.0.s8 %v2397
        %v2399 = vlaneseq
        %v2400 = vshrl.u32 %v2399, 7
        %v2401 = vsub.s32 %v2398, %v2400
        %v2402 = vrot.slane %v2395, %v2401
        %v2403 = vcombine.low %v2341, %v2357
        %v2405 = vunpack.c.l.s4 1983009808
        %v2406 = vunpack.c.0.s8 %v2405
        %v2407 = vlaneseq
        %v2408 = vshrl.u32 %v2407, 7
        %v2409 = vsub.s32 %v2406, %v2408
        %v2410 = vrot.slane %v2403, %v2409
        %v2411 = vcombine.low %v2365, %v2381
        %v2413 = vunpack.c.l.s4 1983009808
        %v2414 = vunpack.c.0.s8 %v2413
        %v2415 = vlaneseq
        %v2416 = vshrl.u32 %v2415, 7
        %v2417 = vsub.s32 %v2414, %v2416
        %v2418 = vrot.slane %v2411, %v2417
        %v2419 = vcombine.low %v2373, %v2389
        %v2421 = vunpack.c.l.s4 1983009808
        %v2422 = vunpack.c.0.s8 %v2421
        %v2423 = vlaneseq
        %v2424 = vshrl.u32 %v2423, 7
        %v2425 = vsub.s32 %v2422, %v2424
        %v2426 = vrot.slane %v2419, %v2425
        %v2427 = vcombine.low %v2402, %v2410
        %v2429 = vunpack.c.l.s4 1934713408
        %v2430 = vunpack.c.0.s8 %v2429
        %v2431 = vlaneseq
        %v2432 = vshrl.u32 %v2431, 7
        %v2433 = vsub.s32 %v2430, %v2432
        %v2434 = vrot.slane %v2427, %v2433
        %v2435 = vcombine.low %v2418, %v2426
        %v2437 = vunpack.c.l.s4 1934713408
        %v2438 = vunpack.c.0.s8 %v2437
        %v2439 = vlaneseq
        %v2440 = vshrl.u32 %v2439, 7
        %v2441 = vsub.s32 %v2438, %v2440
        %v2442 = vrot.slane %v2435, %v2441
        %v2443 = vcombine.low %v2434, %v2442
        %v2444 = vcombine.high %v2434, %v2442
        %v2445 = vcombine.low %v2337, %v2353
        %v2447 = vunpack.c.l.s4 1983009808
        %v2448 = vunpack.c.0.s8 %v2447
        %v2449 = vlaneseq
        %v2450 = vshrl.u32 %v2449, 7
        %v2451 = vsub.s32 %v2448, %v2450
        %v2452 = vrot.slane %v2445, %v2451
        %v2453 = vcombine.low %v2345, %v2361
        %v2455 = vunpack.c.l.s4 1983009808
        %v2456 = vunpack.c.0.s8 %v2455
        %v2457 = vlaneseq
        %v2458 = vshrl.u32 %v2457, 7
        %v2459 = vsub.s32 %v2456, %v2458
        %v2460 = vrot.slane %v2453, %v2459
        %v2461 = vcombine.low %v2369, %v2385
        %v2463 = vunpack.c.l.s4 1983009808
        %v2464 = vunpack.c.0.s8 %v2463
        %v2465 = vlaneseq
        %v2466 = vshrl.u32 %v2465, 7
        %v2467 = vsub.s32 %v2464, %v2466
        %v2468 = vrot.slane %v2461, %v2467
        %v2469 = vcombine.low %v2377, %v2393
        %v2471 = vunpack.c.l.s4 1983009808
        %v2472 = vunpack.c.0.s8 %v2471
        %v2473 = vlaneseq
        %v2474 = vshrl.u32 %v2473, 7
        %v2475 = vsub.s32 %v2472, %v2474
        %v2476 = vrot.slane %v2469, %v2475
        %v2477 = vcombine.low %v2452, %v2460
        %v2479 = vunpack.c.l.s4 1934713408
        %v2480 = vunpack.c.0.s8 %v2479
        %v2481 = vlaneseq
        %v2482 = vshrl.u32 %v2481, 7
        %v2483 = vsub.s32 %v2480, %v2482
        %v2484 = vrot.slane %v2477, %v2483
        %v2485 = vcombine.low %v2468, %v2476
        %v2487 = vunpack.c.l.s4 1934713408
        %v2488 = vunpack.c.0.s8 %v2487
        %v2489 = vlaneseq
        %v2490 = vshrl.u32 %v2489, 7
        %v2491 = vsub.s32 %v2488, %v2490
        %v2492 = vrot.slane %v2485, %v2491
        %v2493 = vcombine.low %v2484, %v2492
        %v2494 = vcombine.high %v2484, %v2492
        %v2497 = vpack.i.b16 %v2493, %v2443
        %v2498 = vshrl.u32 %v2443, 16
        %v2499 = vshrl.u32 %v2493, 16
        %v2500 = vpack.i.b16 %v2499, %v2498
        %v2503 = vpack.i.b16 %v2494, %v2444
        %v2504 = vshrl.u32 %v2444, 16
        %v2505 = vshrl.u32 %v2494, 16
        %v2506 = vpack.i.b16 %v2505, %v2504
        %2507 = vrot.lane.b32.xlu0 %v2500, 8
        %v2508 = vpop.permute.xlu0 %2507
        %2509 = vrot.lane.b32.xlu0 %v2503, 16
        %v2510 = vpop.permute.xlu0 %2509
        %2511 = vrot.lane.b32.xlu0 %v2506, 24
        %v2512 = vpop.permute.xlu0 %2511
        %v2515 = vsel %vm1335, %v2497, %v2508
        %vm2516 = vcmask 130048
        %v2518 = vsel %vm2516, %v2515, %v2510
        %vm2519 = vcmask 195584
        %v2521 = vsel %vm2519, %v2518, %v2512
        %v2522 = vld [vmem:[%s392] sm:$0xf]
        %v2523 = vld [vmem:[%s392 + $0x4] sm:$0xf]
        %v2524 = vld [vmem:[%s392 + $0x8] sm:$0xf]
        %v2525 = vld [vmem:[%s392 + $0xc] sm:$0xf]
        %v2530 = vunpack.c.l.b16 %v2522
        %v2531 = vunpack.c.l.b16 %v2523
        %v2532 = vunpack.c.l.b16 %v2524
        %v2533 = vunpack.c.l.b16 %v2525
        %v2534 = vpack.c.b16 %v2531, %v2530
        %v2535 = vpack.c.b16 %v2533, %v2532
        %2538 = vrot.lane.b32.xlu0 %v430, 32
        %v2539 = vpop.permute.xlu0 %2538
        %v2541 = vsel %vm444, %v2521, 0
        %2543 = vmatprep.subr.bf16.mxu0 0
        %2544 = vmatpush1.bf16.msra.mxu0 0
        %2545 = vmatprep.subr.bf16.mxu0 0
        %2546 = vmatpush1.bf16.msra.mxu0 0
        %2547 = vmatprep.subr.bf16.mxu0 0
        %2548 = vmatpush1.bf16.msra.mxu0 0
        %2549 = vmatprep.subr.bf16.mxu0 0
        %2550 = vmatpush1.bf16.msra.mxu0 0
        %2551 = vmatprep.subr.bf16.mxu0 0
        %2552 = vmatpush1.bf16.msra.mxu0 0
        %2553 = vmatprep.subr.bf16.mxu0 0
        %2554 = vmatpush1.bf16.msra.mxu0 0
        %2555 = vmatprep.subr.bf16.mxu0 0
        %2556 = vmatpush1.bf16.msra.mxu0 %v2535
        %2557 = vmatprep.subr.bf16.mxu0 0
        %2558 = vmatpush1.bf16.msra.mxu0 %v2534
        %2559 = vmatprep.subr.bf16.mxu0 0
        %2560 = vmatpush2.bf16.msra.mxu0 0
        %2561 = vmatprep.subr.bf16.mxu0 0
        %2562 = vmatpush2.bf16.msra.mxu0 0
        %2563 = vmatprep.subr.bf16.mxu0 0
        %2564 = vmatpush2.bf16.msra.mxu0 0
        %2565 = vmatprep.subr.bf16.mxu0 0
        %2566 = vmatpush2.bf16.msra.mxu0 0
        %2567 = vmatprep.subr.bf16.mxu0 0
        %2568 = vmatpush2.bf16.msra.mxu0 0
        %2569 = vmatprep.subr.bf16.mxu0 0
        %2570 = vmatpush2.bf16.msra.mxu0 0
        %2571 = vmatprep.subr.bf16.mxu0 0
        %2572 = vmatpush2.bf16.msra.mxu0 0
        %2573 = vmatprep.subr.bf16.mxu0 0
        %2574 = vmatpush2.bf16.msra.mxu0 0
        %2575 = vmatprep.mubr.bf16.mxu0 0
        %2576 = vmatmul.mubr.bf16.gmra.mxu0 %v2541
        %v2577 = vpop.f32.mrf.mxu0
        %v2578 = vadd.f32 %v2539, %v2577
        %v2579 = vpop.f32.mrf.mxu0
        %v2580 = vpop.f32.mrf.mxu0
        %v2581 = vadd.f32 %v2539, %v2580
        %v2582 = vpop.f32.mrf.mxu0
        %2583 = vdwg.mxu0
        %v2584 = vadd.f32 %v2578, %v418
        %v2585 = vadd.f32 %v2581, %v419
        %v2586 = vsel %vm444, %v2584, 0.0
        %2587 = vadd.xlane.f32.xlu0 %v2586
        %v2588 = vpop.xlane.xlu0 %2587
        %v2589 = vsel %vm444, %v2585, 0.0
        %2590 = vadd.xlane.f32.xlu0 %v2589
        %v2591 = vpop.xlane.xlu0 %2590
        %v2592 = vrcp.pop 32.0
        %v2593 = vmul.f32 %v2588, %v2592
        %v2594 = vmul.f32 %v2591, %v2592
        %v2595 = vsub.f32 %v2584, %v2593
        %v2596 = vsub.f32 %v2585, %v2594
        %v2597 = vmul.f32 %v2595, %v2595
        %v2598 = vmul.f32 %v2596, %v2596
        %v2599 = vsel %vm444, %v2597, 0.0
        %2600 = vadd.xlane.f32.xlu0 %v2599
        %v2601 = vpop.xlane.xlu0 %2600
        %v2602 = vsel %vm444, %v2598, 0.0
        %2603 = vadd.xlane.f32.xlu0 %v2602
        %v2604 = vpop.xlane.xlu0 %2603
        %v2605 = vmul.f32 %v2601, %v2592
        %v2606 = vmul.f32 %v2604, %v2592
        %v2607 = vadd.f32 %v2605, 1e-12
        %v2608 = vadd.f32 %v2606, 1e-12
        %v2609 = vrsqrt.pop %v2607
        %v2610 = vrsqrt.pop %v2608
        %v2611 = vmul.f32 %v2595, %v2609
        %v2612 = vmul.f32 %v2596, %v2610
        %v2613 = vrot.slane %v421, 1
        %v2614 = vlaneseq
        %v2615 = vshrl.u32 %v2614, 7
        %v2616 = vsub.s32 0, %v2615
        %v2617 = vrot.slane %v2613, %v2616
        %v2619 = vmul.f32 %v2611, %v2617
        %v2620 = vmul.f32 %v2612, %v2617
        %2621 = vrot.lane.b32.xlu0 %v421, 96
        %v2622 = vpop.permute.xlu0 %2621
        %v2623 = vrot.slane %v2622, 1
        %v2624 = vlaneseq
        %v2625 = vshrl.u32 %v2624, 7
        %v2626 = vsub.s32 0, %v2625
        %v2627 = vrot.slane %v2623, %v2626
        %v2629 = vadd.f32 %v2619, %v2627
        %v2630 = vadd.f32 %v2620, %v2627
        %v2631 = vpack.c.bf16 %v2630, %v2629
        %v2632 = vld [vmem:[%s397] sm:$0xf]
        %v2633 = vld [vmem:[%s397 + $0x4] sm:$0xf]
        %v2634 = vld [vmem:[%s397 + $0x8] sm:$0xf]
        %v2635 = vld [vmem:[%s397 + $0xc] sm:$0xf]
        %2636 = vrot.lane.b32.xlu0 %v421, 64
        %v2637 = vpop.permute.xlu0 %2636
        %v2638 = vrot.slane %v2637, 1
        %v2639 = vlaneseq
        %v2640 = vshrl.u32 %v2639, 7
        %v2641 = vsub.s32 0, %v2640
        %v2642 = vrot.slane %v2638, %v2641
        %v2648 = vunpack.c.l.b16 %v2632
        %v2649 = vunpack.c.l.b16 %v2633
        %v2650 = vunpack.c.l.b16 %v2634
        %v2651 = vunpack.c.l.b16 %v2635
        %v2652 = vpack.c.b16 %v2649, %v2648
        %v2653 = vpack.c.b16 %v2651, %v2650
        %v2657 = vsel %vm444, %v2631, 0
        %2659 = vmatprep.subr.bf16.mxu0 0
        %2660 = vmatpush1.bf16.msra.mxu0 0
        %2661 = vmatprep.subr.bf16.mxu0 0
        %2662 = vmatpush1.bf16.msra.mxu0 0
        %2663 = vmatprep.subr.bf16.mxu0 0
        %2664 = vmatpush1.bf16.msra.mxu0 0
        %2665 = vmatprep.subr.bf16.mxu0 0
        %2666 = vmatpush1.bf16.msra.mxu0 0
        %2667 = vmatprep.subr.bf16.mxu0 0
        %2668 = vmatpush1.bf16.msra.mxu0 0
        %2669 = vmatprep.subr.bf16.mxu0 0
        %2670 = vmatpush1.bf16.msra.mxu0 0
        %2671 = vmatprep.subr.bf16.mxu0 0
        %2672 = vmatpush1.bf16.msra.mxu0 %v2653
        %2673 = vmatprep.subr.bf16.mxu0 0
        %2674 = vmatpush1.bf16.msra.mxu0 %v2652
        %2675 = vmatprep.subr.bf16.mxu0 0
        %2676 = vmatpush2.bf16.msra.mxu0 0
        %2677 = vmatprep.subr.bf16.mxu0 0
        %2678 = vmatpush2.bf16.msra.mxu0 0
        %2679 = vmatprep.subr.bf16.mxu0 0
        %2680 = vmatpush2.bf16.msra.mxu0 0
        %2681 = vmatprep.subr.bf16.mxu0 0
        %2682 = vmatpush2.bf16.msra.mxu0 0
        %2683 = vmatprep.subr.bf16.mxu0 0
        %2684 = vmatpush2.bf16.msra.mxu0 0
        %2685 = vmatprep.subr.bf16.mxu0 0
        %2686 = vmatpush2.bf16.msra.mxu0 0
        %2687 = vmatprep.subr.bf16.mxu0 0
        %2688 = vmatpush2.bf16.msra.mxu0 0
        %2689 = vmatprep.subr.bf16.mxu0 0
        %2690 = vmatpush2.bf16.msra.mxu0 0
        %2691 = vmatprep.mubr.bf16.mxu0 0
        %2692 = vmatmul.mubr.bf16.gmra.mxu0 %v2657
        %v2693 = vpop.f32.mrf.mxu0
        %v2694 = vadd.f32 %v2642, %v2693
        %v2695 = vpop.f32.mrf.mxu0
        %v2696 = vpop.f32.mrf.mxu0
        %v2697 = vadd.f32 %v2642, %v2696
        %v2698 = vpop.f32.mrf.mxu0
        %2699 = vdwg.mxu0
        %v2700 = vmul.f32 %v2694, %v2694
        %v2701 = vmul.f32 %v2697, %v2697
        %v2702 = vmul.f32 %v2694, %v2700
        %v2703 = vmul.f32 %v2697, %v2701
        %v2704 = vmul.f32 %v2702, 0.044715
        %v2705 = vmul.f32 %v2703, 0.044715
        %v2706 = vadd.f32 %v2694, %v2704
        %v2707 = vadd.f32 %v2697, %v2705
        %v2708 = vmul.f32 %v2706, 0.7978846
        %v2709 = vmul.f32 %v2707, 0.7978846
        %v2710 = vtanh.pop %v2708
        %v2711 = vtanh.pop %v2709
        %v2712 = vadd.f32 %v2710, 1.0
        %v2713 = vadd.f32 %v2711, 1.0
        %v2714 = vmul.f32 %v2712, 0.5
        %v2715 = vmul.f32 %v2713, 0.5
        %v2716 = vmul.f32 %v2694, %v2714
        %v2717 = vmul.f32 %v2697, %v2715
        %v2718 = vpack.c.bf16 %v2717, %v2716
        %v2719 = vld [vmem:[%s402] sm:$0xf]
        %v2720 = vld [vmem:[%s402 + $0x4] sm:$0xf]
        %v2721 = vld [vmem:[%s402 + $0x8] sm:$0xf]
        %v2722 = vld [vmem:[%s402 + $0xc] sm:$0xf]
        %v2723 = vld [vmem:[%s402 + $0x10] sm:$0xf]
        %v2724 = vld [vmem:[%s402 + $0x14] sm:$0xf]
        %v2725 = vld [vmem:[%s402 + $0x18] sm:$0xf]
        %v2726 = vld [vmem:[%s402 + $0x1c] sm:$0xf]
        %v2727 = vrot.slane %v421, 2
        %v2728 = vlaneseq
        %v2729 = vshrl.u32 %v2728, 7
        %v2730 = vsub.s32 0, %v2729
        %v2731 = vrot.slane %v2727, %v2730
        %v2741 = vunpack.c.l.b16 %v2719
        %v2742 = vunpack.c.l.b16 %v2720
        %v2743 = vunpack.c.l.b16 %v2721
        %v2744 = vunpack.c.l.b16 %v2722
        %v2745 = vunpack.c.l.b16 %v2723
        %v2746 = vunpack.c.l.b16 %v2724
        %v2747 = vunpack.c.l.b16 %v2725
        %v2748 = vunpack.c.l.b16 %v2726
        %v2749 = vpack.c.b16 %v2742, %v2741
        %v2750 = vpack.c.b16 %v2744, %v2743
        %v2751 = vpack.c.b16 %v2746, %v2745
        %v2752 = vpack.c.b16 %v2748, %v2747
        %vm2757 = vcmask 523264
        %v2759 = vsel %vm2757, %v2718, 0
        %2761 = vmatprep.subr.bf16.mxu0 0
        %2762 = vmatpush1.bf16.msra.mxu0 0
        %2763 = vmatprep.subr.bf16.mxu0 0
        %2764 = vmatpush1.bf16.msra.mxu0 0
        %2765 = vmatprep.subr.bf16.mxu0 0
        %2766 = vmatpush1.bf16.msra.mxu0 0
        %2767 = vmatprep.subr.bf16.mxu0 0
        %2768 = vmatpush1.bf16.msra.mxu0 0
        %2769 = vmatprep.subr.bf16.mxu0 0
        %2770 = vmatpush1.bf16.msra.mxu0 %v2752
        %2771 = vmatprep.subr.bf16.mxu0 0
        %2772 = vmatpush1.bf16.msra.mxu0 %v2751
        %2773 = vmatprep.subr.bf16.mxu0 0
        %2774 = vmatpush1.bf16.msra.mxu0 %v2750
        %2775 = vmatprep.subr.bf16.mxu0 0
        %2776 = vmatpush1.bf16.msra.mxu0 %v2749
        %2777 = vmatprep.subr.bf16.mxu0 0
        %2778 = vmatpush2.bf16.msra.mxu0 0
        %2779 = vmatprep.subr.bf16.mxu0 0
        %2780 = vmatpush2.bf16.msra.mxu0 0
        %2781 = vmatprep.subr.bf16.mxu0 0
        %2782 = vmatpush2.bf16.msra.mxu0 0
        %2783 = vmatprep.subr.bf16.mxu0 0
        %2784 = vmatpush2.bf16.msra.mxu0 0
        %2785 = vmatprep.subr.bf16.mxu0 0
        %2786 = vmatpush2.bf16.msra.mxu0 0
        %2787 = vmatprep.subr.bf16.mxu0 0
        %2788 = vmatpush2.bf16.msra.mxu0 0
        %2789 = vmatprep.subr.bf16.mxu0 0
        %2790 = vmatpush2.bf16.msra.mxu0 0
        %2791 = vmatprep.subr.bf16.mxu0 0
        %2792 = vmatpush2.bf16.msra.mxu0 0
        %2793 = vmatprep.mubr.bf16.mxu0 0
        %2794 = vmatmul.mubr.bf16.gmra.mxu0 %v2759
        %v2795 = vpop.f32.mrf.mxu0
        %v2796 = vadd.f32 %v2731, %v2795
        %v2797 = vpop.f32.mrf.mxu0
        %v2798 = vpop.f32.mrf.mxu0
        %v2799 = vadd.f32 %v2731, %v2798
        %v2800 = vpop.f32.mrf.mxu0
        %2801 = vdwg.mxu0
        %v2802 = vadd.f32 %v2796, %v2629
        %v2803 = vadd.f32 %v2799, %v2630
        %v2804 = vsel %vm444, %v2802, 0.0
        %2805 = vadd.xlane.f32.xlu0 %v2804
        %v2806 = vpop.xlane.xlu0 %2805
        %v2807 = vsel %vm444, %v2803, 0.0
        %2808 = vadd.xlane.f32.xlu0 %v2807
        %v2809 = vpop.xlane.xlu0 %2808
        %v2810 = vmul.f32 %v2806, %v2592
        %v2811 = vmul.f32 %v2809, %v2592
        %v2812 = vsub.f32 %v2802, %v2810
        %v2813 = vsub.f32 %v2803, %v2811
        %v2814 = vmul.f32 %v2812, %v2812
        %v2815 = vmul.f32 %v2813, %v2813
        %v2816 = vsel %vm444, %v2814, 0.0
        %2817 = vadd.xlane.f32.xlu0 %v2816
        %v2818 = vpop.xlane.xlu0 %2817
        %v2819 = vsel %vm444, %v2815, 0.0
        %2820 = vadd.xlane.f32.xlu0 %v2819
        %v2821 = vpop.xlane.xlu0 %2820
        %v2822 = vmul.f32 %v2818, %v2592
        %v2823 = vmul.f32 %v2821, %v2592
        %v2824 = vadd.f32 %v2822, 1e-12
        %v2825 = vadd.f32 %v2823, 1e-12
        %v2826 = vrsqrt.pop %v2824
        %v2827 = vrsqrt.pop %v2825
        %v2828 = vmul.f32 %v2812, %v2826
        %v2829 = vmul.f32 %v2813, %v2827
        %v2830 = vrot.slane %v2622, 2
        %v2831 = vlaneseq
        %v2832 = vshrl.u32 %v2831, 7
        %v2833 = vsub.s32 0, %v2832
        %v2834 = vrot.slane %v2830, %v2833
        %v2836 = vmul.f32 %v2828, %v2834
        %v2837 = vmul.f32 %v2829, %v2834
        %v2838 = vrot.slane %v2637, 2
        %v2839 = vlaneseq
        %v2840 = vshrl.u32 %v2839, 7
        %v2841 = vsub.s32 0, %v2840
        %v2842 = vrot.slane %v2838, %v2841
        %v2844 = vadd.f32 %v2836, %v2842
        %v2845 = vadd.f32 %v2837, %v2842
        %2846 = vst.msk [vmem:[#allocation2] sm:$0xff] %vm444, %v2844
        %2847 = vst.msk [vmem:[#allocation2 + $0x8] sm:$0xff] %vm444, %v2845
        %p2848 = scmp.eq.s32.totalorder %s26, 1
        // Predicated region
        $region61: #{tpu_custom_call.1} parent=47 // pred_check
          %p2849 = pneg %p2848
        $region62: #{tpu_custom_call.1} parent=47 // pred_check_branch
          %2851 = sbr.rel (%p2849) target = $region64
        $region63: #{tpu_custom_call.1} parent=47 // pred_region
          %2852 = vst.msk [vmem:[#allocation8] sm:$0xff] %vm444, %v2844
          %2853 = vst.msk [vmem:[#allocation8 + $0x8] sm:$0xff] %vm444, %v2845
        $region64: #{tpu_custom_call.1} parent=47 // pred_fallthru
          _
        // Predicated region
        $region65: #{tpu_custom_call.1} parent=47 // pred_check
          %p2854 = pneg %p233
        $region66: #{tpu_custom_call.1} parent=47 // pred_check_branch
          %2856 = sbr.rel (%p2854) target = $region68
        $region67: #{tpu_custom_call.1} parent=47 // pred_region
          %s2857 = smul.u32 2, %s25
          %s2859 = ssub.s32 256, 256
          %2860 = vsyncadd [#allocation5], %s2859
          %s2861 = smul.addr %s2857, 128
          %s2862 = scalar_lea.hbm %s7, %s2861
          %s2863 = sshll.u32 [#allocation8], 4
          %s2864 = int_to_ptr.vmem [resolvable:$true] %s2863
          %2869 = dma.vmem_to_hbm [thread:$0]  %s2864, 256, %s2862, [#allocation5], 128, 128, 8
        $region68: #{tpu_custom_call.1} parent=47 // pred_fallthru
          _
        // Predicated region
        $region69: #{tpu_custom_call.1} parent=47 // pred_check
          %p2870 = pneg %p233
        $region70: #{tpu_custom_call.1} parent=47 // pred_check_branch
          %2872 = sbr.rel (%p2870) target = $region72
        $region71: #{tpu_custom_call.1} parent=47 // pred_region
          %2873 = dma.done [#allocation5], 256
        $region72: #{tpu_custom_call.1} parent=47 // pred_fallthru
          _
      $region48: #{tpu_custom_call.1} parent=5 // pred_fallthru
        _
      %p2874 = scmp.le.s32.totalorder 2, %s16
      // Predicated region
      $region73: #{tpu_custom_call.1} parent=5 // pred_check
        %p2875 = pneg %p2874
      $region74: #{tpu_custom_call.1} parent=5 // pred_check_branch
        %2877 = sbr.rel (%p2875) target = $region76
      $region75: #{tpu_custom_call.1} parent=5 // pred_region
        %s2878 = ssub.s32 %s16, 2
      $region76: #{tpu_custom_call.1} parent=5 // pred_fallthru
        _
    $region6: #{tpu_custom_call.1} parent=1 // loop_footer
      %s20 = sadd.s32 1, %s16
    $region7: #{tpu_custom_call.1} parent=1 // loop_footer_branch
      %15 = sbr.rel target = $region3
    $region8: #{tpu_custom_call.1} parent=1 // loop_exit
      _
    %2879 = vsyncpa [#allocation4], 1
    %s2880 = scalar_lea.sflag [#allocation4], 1
    %2881 = vsyncpa %s2880, 1
    %2882 = vsyncpa [#allocation7], 1
    %2883 = vsyncpa [#allocation5], 1
    %s2884 = scalar_lea.sflag [#allocation5], 1
    %2885 = vsyncpa %s2884, 1

</llo_original>
